<compile_context>
chip_gen: v6e
topology: v6e:2x2x1
jax: 0.10.0
libtpu: 0.0.40
codegen_flags: <defaults>
</compile_context>

<pallas_src>
import functools

import jax
import jax.numpy as jnp
import numpy as np
from jax.experimental import pallas as pl
from jax.experimental.pallas import tpu as pltpu

LANE = 128


def _round_up(x, m):
    return ((x + m - 1) // m) * m


def _tpu_vmem_bytes():
    """Physical VMEM capacity; conservative 64 MiB fallback (v7x per-TC) if the query fails."""
    try:
        return int(pltpu.get_tpu_info().vmem_capacity_bytes)
    except Exception:
        return 64 * 1024 * 1024


# ----------------------------------------------------------------------------
# Kernels
# ----------------------------------------------------------------------------
def sage_layer_kernel(a_ref, xk_ref, xi_ref, invdeg_ref, wl_ref, wr_ref,
                      scale_ref, shift_ref, o_ref, acc_ref, self_ref, *, apply_relu):
    """One SAGE layer, tiled: grid = (row tiles i, reduction tiles k over A's columns)."""
    k = pl.program_id(1)

    @pl.when(k == 0)
    def _():
        acc_ref[...] = jnp.zeros_like(acc_ref)
        # Self term once per row tile, off the reduction critical path (k == 0, not the epilogue).
        self_ref[...] = jnp.dot(xi_ref[...], wr_ref[...],
                                preferred_element_type=jnp.float32)

    # Aggregation accumulation: acc += A_counts[i, k] @ x[k]   (bf16 inputs, f32 accumulate)
    acc_ref[...] += jnp.dot(a_ref[...], xk_ref[...],
                            preferred_element_type=jnp.float32)

    @pl.when(k == pl.num_programs(1) - 1)
    def _():
        # Mean normalization in f32, then one MXU pass for the Wl projection.
        agg = (acc_ref[...] * invdeg_ref[...]).astype(xk_ref.dtype)
        h = jnp.dot(agg, wl_ref[...], preferred_element_type=jnp.float32) + self_ref[...]
        # folded bias + BatchNorm (eval) as one FMA
        h = h * scale_ref[...] + shift_ref[...]
        if apply_relu:
            h = jnp.maximum(h, 0.0)
        o_ref[...] = h.astype(o_ref.dtype)


def sage_fused_kernel(a_ref, x_ref, invdeg_ref, wl_ref, wr_ref, scale_ref, shift_ref,
                      o_ref, h_ref, *, num_layers):
    """All layers fused; features stay resident in the bf16 VMEM scratch h_ref."""
    for li in range(num_layers):                       # static, unrolled
        src = x_ref if li == 0 else h_ref              # no initial x -> h VMEM copy
        feats = src[...]
        agg = jnp.dot(a_ref[...], feats, preferred_element_type=jnp.float32)
        agg = (agg * invdeg_ref[...]).astype(feats.dtype)
        z = (jnp.dot(agg, wl_ref[li], preferred_element_type=jnp.float32)
             + jnp.dot(feats, wr_ref[li], preferred_element_type=jnp.float32))
        z = z * scale_ref[li] + shift_ref[li]          # folded bias + BN
        if li < num_layers - 1:
            h_ref[...] = jnp.maximum(z, 0.0).astype(h_ref.dtype)
        else:
            o_ref[...] = z
    # TODO(synk): F.dropout is identity in eval mode (training=False), which is what we model.


# ----------------------------------------------------------------------------
# pallas_call wrappers
# ----------------------------------------------------------------------------
def sage_layer_tiled(A, inv_deg, x, wl, wr, scale, shift, *, apply_relu, tm, tk, vmem_limit):
    n_pad = A.shape[0]
    f_in_pad = x.shape[1]
    f_out_pad = wl.shape[1]
    out_dtype = jnp.bfloat16 if apply_relu else jnp.float32   # bf16 hidden activations
    grid = (n_pad // tm, n_pad // tk)
    kernel = functools.partial(sage_layer_kernel, apply_relu=apply_relu)
    return pl.pallas_call(
        kernel,
        out_shape=jax.ShapeDtypeStruct((n_pad, f_out_pad), out_dtype),
        grid_spec=pltpu.PrefetchScalarGridSpec(
            num_scalar_prefetch=0,
            grid=grid,
            in_specs=[
                pl.BlockSpec((tm, tk), lambda i, k: (i, k)),                 # A (edge counts)
                pl.BlockSpec((tk, f_in_pad), lambda i, k: (k, 0)),           # x stream (aggregation)
                pl.BlockSpec((tm, f_in_pad), lambda i, k: (i, 0)),           # x self term (resident per i)
                pl.BlockSpec((tm, 1), lambda i, k: (i, 0)),                  # 1/deg, f32
                pl.BlockSpec((f_in_pad, f_out_pad), lambda i, k: (0, 0)),    # Wl
                pl.BlockSpec((f_in_pad, f_out_pad), lambda i, k: (0, 0)),    # Wr
                pl.BlockSpec((1, f_out_pad), lambda i, k: (0, 0)),           # scale (bias+BN folded)
                pl.BlockSpec((1, f_out_pad), lambda i, k: (0, 0)),           # shift
            ],
            out_specs=pl.BlockSpec((tm, f_out_pad), lambda i, k: (i, 0)),
            scratch_shapes=[pltpu.VMEM((tm, f_in_pad), jnp.float32),         # aggregation acc
                            pltpu.VMEM((tm, f_out_pad), jnp.float32)],       # self-term (xi @ Wr)
        ),
        compiler_params=pltpu.CompilerParams(
            dimension_semantics=("parallel", "arbitrary"),
            vmem_limit_bytes=vmem_limit,
        ),
    )(A, x, x, inv_deg, wl, wr, scale, shift)


def sage_fused(A, x, inv_deg, Wl, Wr, S, SH, num_layers, vmem_limit):
    n_pad, f_pad = x.shape
    vmem = pl.BlockSpec(memory_space=pltpu.MemorySpace.VMEM)
    kernel = functools.partial(sage_fused_kernel, num_layers=num_layers)
    return pl.pallas_call(
        kernel,
        out_shape=jax.ShapeDtypeStruct((n_pad, f_pad), jnp.float32),
        in_specs=[vmem] * 7,
        out_specs=vmem,
        scratch_shapes=[pltpu.VMEM((n_pad, f_pad), jnp.bfloat16)],
        compiler_params=pltpu.CompilerParams(vmem_limit_bytes=vmem_limit),
    )(A, x, inv_deg, Wl, Wr, S, SH)


# ----------------------------------------------------------------------------
# Host-side (plain JAX) glue
# ----------------------------------------------------------------------------
def build_adjacency(edge_index, n_pad):
    """Dense edge-count adjacency (bf16, exact small integers) + f32 inverse degree so that
    ((A @ X) * inv_deg)[i] == scatter_mean(X[src], dst)[i]."""
    src, dst = edge_index[0], edge_index[1]
    counts = jnp.zeros((n_pad, n_pad), jnp.float32).at[dst, src].add(1.0)
    deg = counts.sum(axis=1, keepdims=True)
    inv_deg = jnp.where(deg > 0.0, 1.0 / jnp.maximum(deg, 1.0), 0.0)   # isolated/padded rows -> 0
    return counts.astype(jnp.bfloat16), inv_deg.astype(jnp.float32)


def prepare_layer(wl, wr, b, bn, f_in_pad, f_out_pad, is_last, eps=1e-5):
    """Pad the two SAGE weight matrices and fold bias + BatchNorm (eval) into scale/shift."""
    f_in, f_out = wl.shape
    wl_p = jnp.zeros((f_in_pad, f_out_pad), jnp.float32).at[:f_in, :f_out].set(wl)
    wr_p = jnp.zeros((f_in_pad, f_out_pad), jnp.float32).at[:f_in, :f_out].set(wr)
    if is_last:
        scale = jnp.ones((f_out_pad,), jnp.float32)
        shift = jnp.zeros((f_out_pad,), jnp.float32).at[:f_out].set(b)
    else:
        gamma, beta, mean, var = bn
        s = gamma * jax.lax.rsqrt(var + eps)
        sh = (b - mean) * s + beta
        scale = jnp.zeros((f_out_pad,), jnp.float32).at[:f_out].set(s)   # zeros padded cols
        shift = jnp.zeros((f_out_pad,), jnp.float32).at[:f_out].set(sh)
    return (wl_p.astype(jnp.bfloat16), wr_p.astype(jnp.bfloat16),
            scale.reshape(1, f_out_pad), shift.reshape(1, f_out_pad))


def init_params(key, input_dim, hidden_dim, output_dim, num_layers):
    dims = [input_dim] + [hidden_dim] * (num_layers - 1) + [output_dim]
    params = []
    for li in range(num_layers):
        f_in, f_out = dims[li], dims[li + 1]
        key, k1, k2, k3 = jax.random.split(key, 4)
        bound = 1.0 / np.sqrt(f_in)
        wl = jax.random.uniform(k1, (f_in, f_out), jnp.float32, -bound, bound)
        wr = jax.random.uniform(k2, (f_in, f_out), jnp.float32, -bound, bound)
        b = jax.random.uniform(k3, (f_out,), jnp.float32, -bound, bound)
        # BatchNorm1d defaults: gamma=1, beta=0, running_mean=0, running_var=1
        bn = (jnp.ones((f_out,), jnp.float32), jnp.zeros((f_out,), jnp.float32),
              jnp.zeros((f_out,), jnp.float32), jnp.ones((f_out,), jnp.float32))
        params.append((wl, wr, b, bn))
    return params


def sagenet_forward(x, edge_index, params, *, fuse_layers=None, tile_n=512):
    # torch.sort(edge_index, dim=1)[0]: sorts src and dst rows independently — this mirrors
    # the reference module exactly (even though it scrambles src/dst pairing).
    edge_index = jnp.sort(edge_index, axis=1)
    N, f_in0 = x.shape
    num_layers = len(params)
    dims = [f_in0] + [p[0].shape[1] for p in params]
    dims_pad = [_round_up(d, LANE) for d in dims]   # keep 128-lane padding (v5e MXU-native; wider
                                                    # padding just wastes flops/traffic here)

    # Generation-aware budgets: v5e/v6e have 128 MiB physical VMEM, v7x has 64 MiB per TC.
    big_vmem = _tpu_vmem_bytes() >= 96 * 1024 * 1024
    fused_limit = (96 if big_vmem else 44) * 1024 * 1024
    tiled_limit = (64 if big_vmem else 32) * 1024 * 1024

    if fuse_layers is None:
        f_pad = max(dims_pad)
        n_pad_f = _round_up(N, 8)
        est = (n_pad_f * n_pad_f * 2                      # A (bf16)
               + 2 * n_pad_f * f_pad * 2                  # x input + h scratch (bf16)
               + n_pad_f * f_pad * 4                      # f32 output
               + n_pad_f * LANE * 4                       # inv_deg (lane-padded f32)
               + num_layers * 2 * f_pad * f_pad * 2)      # stacked weights (bf16)
        fuse_n_max = 4096 if big_vmem else 2048           # v7x: keep medium graphs on the tiled
        fuse_layers = (N <= fuse_n_max and f_pad <= 512   # path so both TCs stay busy
                       and est <= int(0.8 * fused_limit))

    if fuse_layers:
        # Small graphs: everything stays VMEM-resident -> single launch, no inter-layer HBM trips.
        f_pad = max(dims_pad)
        n_pad = _round_up(N, 8)
        A, inv_deg = build_adjacency(edge_index, n_pad)
        xp = jnp.zeros((n_pad, f_pad), jnp.bfloat16).at[:N, :f_in0].set(
            x.astype(jnp.bfloat16))
        wl_l, wr_l, s_l, sh_l = [], [], [], []
        for li, (wl, wr, b, bn) in enumerate(params):
            wl_p, wr_p, s, sh = prepare_layer(wl, wr, b, bn, f_pad, f_pad,
                                              li == num_layers - 1)
            wl_l.append(wl_p); wr_l.append(wr_p); s_l.append(s); sh_l.append(sh)
        out = sage_fused(A, xp, inv_deg, jnp.stack(wl_l), jnp.stack(wr_l),
                         jnp.stack(s_l), jnp.stack(sh_l), num_layers, fused_limit)
        return out[:N, :dims[-1]]

    # Tiled, per-layer path (scales to large N; A is pipelined HBM<->VMEM in blocks).
    if N <= tile_n:
        n_pad = _round_up(N, 8)
        tm = tk = n_pad
    else:
        n_pad = _round_up(N, tile_n)
        tm = tk = tile_n
    A, inv_deg = build_adjacency(edge_index, n_pad)
    h = jnp.zeros((n_pad, dims_pad[0]), jnp.bfloat16).at[:N, :f_in0].set(
        x.astype(jnp.bfloat16))
    for li, (wl, wr, b, bn) in enumerate(params):
        last = li == num_layers - 1
        wl_p, wr_p, s, sh = prepare_layer(wl, wr, b, bn, dims_pad[li], dims_pad[li + 1], last)
        # hidden layers come back bf16 straight from the kernel; the last layer stays f32
        h = sage_layer_tiled(A, inv_deg, h, wl_p, wr_p, s, sh,
                             apply_relu=not last, tm=tm, tk=tk, vmem_limit=tiled_limit)
    return h[:N, :dims[-1]]


def sagenet_reference(x, edge_index, params, eps=1e-5):
    """Pure-JAX f32 reference of the same forward pass."""
    edge_index = jnp.sort(edge_index, axis=1)
    N = x.shape[0]
    src, dst = edge_index[0], edge_index[1]
    A = jnp.zeros((N, N), jnp.float32).at[dst, src].add(1.0)
    deg = A.sum(axis=1, keepdims=True)
    A = A / jnp.where(deg > 0.0, deg, 1.0)
    num_layers = len(params)
    h = x
    for li, (wl, wr, b, (gamma, beta, mean, var)) in enumerate(params):
        z = (A @ h) @ wl + h @ wr + b
        if li < num_layers - 1:
            z = (z - mean) * jax.lax.rsqrt(var + eps) * gamma + beta
            z = jnp.maximum(z, 0.0)
        h = z
    return h


if __name__ == "__main__":
    input_dim, hidden_dim, output_dim, num_layers = 32, 32, 16, 3
    key = jax.random.PRNGKey(0)
    kx, ke, kp = jax.random.split(key, 3)
    params = init_params(kp, input_dim, hidden_dim, output_dim, num_layers)

    # --- small graph: fused all-layers-in-one-kernel path ---
    N, E = 64, 256
    x = jax.random.normal(kx, (N, input_dim), jnp.float32)
    edge_index = jax.random.randint(ke, (2, E), 0, N, jnp.int32)
    out_fused = jax.block_until_ready(sagenet_forward(x, edge_index, params))
    assert out_fused.shape == (N, output_dim), out_fused.shape

    # --- larger graph: tiled per-layer path (forced), 2x2 grid exercises the accumulator ---
    N2, E2 = 200, 1024
    kx2, ke2 = jax.random.split(jax.random.PRNGKey(1))
    x2 = jax.random.normal(kx2, (N2, input_dim), jnp.float32)
    edge_index2 = jax.random.randint(ke2, (2, E2), 0, N2, jnp.int32)
    out_tiled = jax.block_until_ready(
        sagenet_forward(x2, edge_index2, params, fuse_layers=False, tile_n=128))
    assert out_tiled.shape == (N2, output_dim), out_tiled.shape

    # --- correctness vs pure-JAX f32 reference (loose tolerance: bf16 inputs, f32 accumulate) ---
    ref1 = sagenet_reference(x, edge_index, params)
    ref2 = sagenet_reference(x2, edge_index2, params)
    np.testing.assert_allclose(np.asarray(out_fused), np.asarray(ref1), rtol=1e-1, atol=1e-1)
    np.testing.assert_allclose(np.asarray(out_tiled), np.asarray(ref2), rtol=1e-1, atol=1e-1)

    print("KERNEL_OK")
</pallas_src>

<mosaic_0001>
module attributes {stable_mosaic.version = 11 : i64} {
  func.func @sage_fused_kernel(%arg0: memref<64x64xbf16, #tpu.memory_space<vmem>>, %arg1: memref<64x128xbf16, #tpu.memory_space<vmem>>, %arg2: memref<64x1xf32, #tpu.memory_space<vmem>>, %arg3: memref<3x128x128xbf16, #tpu.memory_space<vmem>>, %arg4: memref<3x128x128xbf16, #tpu.memory_space<vmem>>, %arg5: memref<3x1x128xf32, #tpu.memory_space<vmem>>, %arg6: memref<3x1x128xf32, #tpu.memory_space<vmem>>, %arg7: memref<64x128xf32, #tpu.memory_space<vmem>>, %arg8: memref<64x128xbf16, #tpu.memory_space<vmem>>) attributes {dimension_semantics = [], scalar_prefetch = 0 : i64, scratch_operands = 1 : i64, tpu.core_type = #tpu.core_type<tc>} {
    %c0 = arith.constant 0 : index
    %c0_0 = arith.constant 0 : index
    %0 = vector.load %arg1[%c0, %c0_0] : memref<64x128xbf16, #tpu.memory_space<vmem>>, vector<64x128xbf16>
    %c0_1 = arith.constant 0 : index
    %c0_2 = arith.constant 0 : index
    %1 = vector.load %arg0[%c0_1, %c0_2] : memref<64x64xbf16, #tpu.memory_space<vmem>>, vector<64x64xbf16>
    %cst = arith.constant dense<0.000000e+00> : vector<64x128xf32>
    %2 = tpu.matmul %1, %0, %cst {dimension_numbers = #tpu.dot_dimension_numbers<[1], [0], [0], [1], [0, 0, 1, 1], [], []>} : vector<64x64xbf16>, vector<64x128xbf16>, vector<64x128xf32> -> vector<64x128xf32>
    %c0_3 = arith.constant 0 : index
    %c0_4 = arith.constant 0 : index
    %3 = vector.load %arg2[%c0_3, %c0_4] : memref<64x1xf32, #tpu.memory_space<vmem>>, vector<64x1xf32>
    %4 = vector.broadcast %3 : vector<64x1xf32> to vector<64x128xf32>
    %5 = arith.mulf %2, %4 : vector<64x128xf32>
    %6 = arith.truncf %5 : vector<64x128xf32> to vector<64x128xbf16>
    %c0_5 = arith.constant 0 : index
    %c0_6 = arith.constant 0 : index
    %c0_7 = arith.constant 0 : index
    %7 = vector.load %arg3[%c0_5, %c0_6, %c0_7] : memref<3x128x128xbf16, #tpu.memory_space<vmem>>, vector<1x128x128xbf16>
    %8 = vector.shape_cast %7 : vector<1x128x128xbf16> to vector<128x128xbf16>
    %cst_8 = arith.constant dense<0.000000e+00> : vector<64x128xf32>
    %9 = tpu.matmul %6, %8, %cst_8 {dimension_numbers = #tpu.dot_dimension_numbers<[1], [0], [0], [1], [0, 0, 1, 1], [], []>} : vector<64x128xbf16>, vector<128x128xbf16>, vector<64x128xf32> -> vector<64x128xf32>
    %c0_9 = arith.constant 0 : index
    %c0_10 = arith.constant 0 : index
    %c0_11 = arith.constant 0 : index
    %10 = vector.load %arg4[%c0_9, %c0_10, %c0_11] : memref<3x128x128xbf16, #tpu.memory_space<vmem>>, vector<1x128x128xbf16>
    %11 = vector.shape_cast %10 : vector<1x128x128xbf16> to vector<128x128xbf16>
    %cst_12 = arith.constant dense<0.000000e+00> : vector<64x128xf32>
    %12 = tpu.matmul %0, %11, %cst_12 {dimension_numbers = #tpu.dot_dimension_numbers<[1], [0], [0], [1], [0, 0, 1, 1], [], []>} : vector<64x128xbf16>, vector<128x128xbf16>, vector<64x128xf32> -> vector<64x128xf32>
    %13 = arith.addf %9, %12 : vector<64x128xf32>
    %c0_13 = arith.constant 0 : index
    %c0_14 = arith.constant 0 : index
    %c0_15 = arith.constant 0 : index
    %14 = vector.load %arg5[%c0_13, %c0_14, %c0_15] : memref<3x1x128xf32, #tpu.memory_space<vmem>>, vector<1x1x128xf32>
    %15 = vector.shape_cast %14 : vector<1x1x128xf32> to vector<1x128xf32>
    %16 = vector.broadcast %15 : vector<1x128xf32> to vector<64x128xf32>
    %17 = arith.mulf %13, %16 : vector<64x128xf32>
    %c0_16 = arith.constant 0 : index
    %c0_17 = arith.constant 0 : index
    %c0_18 = arith.constant 0 : index
    %18 = vector.load %arg6[%c0_16, %c0_17, %c0_18] : memref<3x1x128xf32, #tpu.memory_space<vmem>>, vector<1x1x128xf32>
    %19 = vector.shape_cast %18 : vector<1x1x128xf32> to vector<1x128xf32>
    %20 = vector.broadcast %19 : vector<1x128xf32> to vector<64x128xf32>
    %21 = arith.addf %17, %20 : vector<64x128xf32>
    %cst_19 = arith.constant 0.000000e+00 : f32
    %22 = vector.broadcast %cst_19 : f32 to vector<64x128xf32>
    %23 = arith.maximumf %21, %22 : vector<64x128xf32>
    %24 = arith.truncf %23 : vector<64x128xf32> to vector<64x128xbf16>
    %c0_20 = arith.constant 0 : index
    %c0_21 = arith.constant 0 : index
    %25 = vector.load %arg8[%c0_20, %c0_21] : memref<64x128xbf16, #tpu.memory_space<vmem>>, vector<64x128xbf16>
    tpu.vector_store %arg8[%c0_20, %c0_21], %24 {strides = array<i32>} : memref<64x128xbf16, #tpu.memory_space<vmem>>, vector<64x128xbf16>,
    %c0_22 = arith.constant 0 : index
    %c0_23 = arith.constant 0 : index
    %26 = vector.load %arg8[%c0_22, %c0_23] : memref<64x128xbf16, #tpu.memory_space<vmem>>, vector<64x128xbf16>
    %c0_24 = arith.constant 0 : index
    %c0_25 = arith.constant 0 : index
    %27 = vector.load %arg0[%c0_24, %c0_25] : memref<64x64xbf16, #tpu.memory_space<vmem>>, vector<64x64xbf16>
    %cst_26 = arith.constant dense<0.000000e+00> : vector<64x128xf32>
    %28 = tpu.matmul %27, %26, %cst_26 {dimension_numbers = #tpu.dot_dimension_numbers<[1], [0], [0], [1], [0, 0, 1, 1], [], []>} : vector<64x64xbf16>, vector<64x128xbf16>, vector<64x128xf32> -> vector<64x128xf32>
    %c0_27 = arith.constant 0 : index
    %c0_28 = arith.constant 0 : index
    %29 = vector.load %arg2[%c0_27, %c0_28] : memref<64x1xf32, #tpu.memory_space<vmem>>, vector<64x1xf32>
    %30 = vector.broadcast %29 : vector<64x1xf32> to vector<64x128xf32>
    %31 = arith.mulf %28, %30 : vector<64x128xf32>
    %32 = arith.truncf %31 : vector<64x128xf32> to vector<64x128xbf16>
    %c1 = arith.constant 1 : index
    %c0_29 = arith.constant 0 : index
    %c0_30 = arith.constant 0 : index
    %33 = vector.load %arg3[%c1, %c0_29, %c0_30] : memref<3x128x128xbf16, #tpu.memory_space<vmem>>, vector<1x128x128xbf16>
    %34 = vector.shape_cast %33 : vector<1x128x128xbf16> to vector<128x128xbf16>
    %cst_31 = arith.constant dense<0.000000e+00> : vector<64x128xf32>
    %35 = tpu.matmul %32, %34, %cst_31 {dimension_numbers = #tpu.dot_dimension_numbers<[1], [0], [0], [1], [0, 0, 1, 1], [], []>} : vector<64x128xbf16>, vector<128x128xbf16>, vector<64x128xf32> -> vector<64x128xf32>
    %c1_32 = arith.constant 1 : index
    %c0_33 = arith.constant 0 : index
    %c0_34 = arith.constant 0 : index
    %36 = vector.load %arg4[%c1_32, %c0_33, %c0_34] : memref<3x128x128xbf16, #tpu.memory_space<vmem>>, vector<1x128x128xbf16>
    %37 = vector.shape_cast %36 : vector<1x128x128xbf16> to vector<128x128xbf16>
    %cst_35 = arith.constant dense<0.000000e+00> : vector<64x128xf32>
    %38 = tpu.matmul %26, %37, %cst_35 {dimension_numbers = #tpu.dot_dimension_numbers<[1], [0], [0], [1], [0, 0, 1, 1], [], []>} : vector<64x128xbf16>, vector<128x128xbf16>, vector<64x128xf32> -> vector<64x128xf32>
    %39 = arith.addf %35, %38 : vector<64x128xf32>
    %c1_36 = arith.constant 1 : index
    %c0_37 = arith.constant 0 : index
    %c0_38 = arith.constant 0 : index
    %40 = vector.load %arg5[%c1_36, %c0_37, %c0_38] : memref<3x1x128xf32, #tpu.memory_space<vmem>>, vector<1x1x128xf32>
    %41 = vector.shape_cast %40 : vector<1x1x128xf32> to vector<1x128xf32>
    %42 = vector.broadcast %41 : vector<1x128xf32> to vector<64x128xf32>
    %43 = arith.mulf %39, %42 : vector<64x128xf32>
    %c1_39 = arith.constant 1 : index
    %c0_40 = arith.constant 0 : index
    %c0_41 = arith.constant 0 : index
    %44 = vector.load %arg6[%c1_39, %c0_40, %c0_41] : memref<3x1x128xf32, #tpu.memory_space<vmem>>, vector<1x1x128xf32>
    %45 = vector.shape_cast %44 : vector<1x1x128xf32> to vector<1x128xf32>
    %46 = vector.broadcast %45 : vector<1x128xf32> to vector<64x128xf32>
    %47 = arith.addf %43, %46 : vector<64x128xf32>
    %cst_42 = arith.constant 0.000000e+00 : f32
    %48 = vector.broadcast %cst_42 : f32 to vector<64x128xf32>
    %49 = arith.maximumf %47, %48 : vector<64x128xf32>
    %50 = arith.truncf %49 : vector<64x128xf32> to vector<64x128xbf16>
    %c0_43 = arith.constant 0 : index
    %c0_44 = arith.constant 0 : index
    %51 = vector.load %arg8[%c0_43, %c0_44] : memref<64x128xbf16, #tpu.memory_space<vmem>>, vector<64x128xbf16>
    tpu.vector_store %arg8[%c0_43, %c0_44], %50 {strides = array<i32>} : memref<64x128xbf16, #tpu.memory_space<vmem>>, vector<64x128xbf16>,
    %c0_45 = arith.constant 0 : index
    %c0_46 = arith.constant 0 : index
    %52 = vector.load %arg8[%c0_45, %c0_46] : memref<64x128xbf16, #tpu.memory_space<vmem>>, vector<64x128xbf16>
    %c0_47 = arith.constant 0 : index
    %c0_48 = arith.constant 0 : index
    %53 = vector.load %arg0[%c0_47, %c0_48] : memref<64x64xbf16, #tpu.memory_space<vmem>>, vector<64x64xbf16>
    %cst_49 = arith.constant dense<0.000000e+00> : vector<64x128xf32>
    %54 = tpu.matmul %53, %52, %cst_49 {dimension_numbers = #tpu.dot_dimension_numbers<[1], [0], [0], [1], [0, 0, 1, 1], [], []>} : vector<64x64xbf16>, vector<64x128xbf16>, vector<64x128xf32> -> vector<64x128xf32>
    %c0_50 = arith.constant 0 : index
    %c0_51 = arith.constant 0 : index
    %55 = vector.load %arg2[%c0_50, %c0_51] : memref<64x1xf32, #tpu.memory_space<vmem>>, vector<64x1xf32>
    %56 = vector.broadcast %55 : vector<64x1xf32> to vector<64x128xf32>
    %57 = arith.mulf %54, %56 : vector<64x128xf32>
    %58 = arith.truncf %57 : vector<64x128xf32> to vector<64x128xbf16>
    %c2 = arith.constant 2 : index
    %c0_52 = arith.constant 0 : index
    %c0_53 = arith.constant 0 : index
    %59 = vector.load %arg3[%c2, %c0_52, %c0_53] : memref<3x128x128xbf16, #tpu.memory_space<vmem>>, vector<1x128x128xbf16>
    %60 = vector.shape_cast %59 : vector<1x128x128xbf16> to vector<128x128xbf16>
    %cst_54 = arith.constant dense<0.000000e+00> : vector<64x128xf32>
    %61 = tpu.matmul %58, %60, %cst_54 {dimension_numbers = #tpu.dot_dimension_numbers<[1], [0], [0], [1], [0, 0, 1, 1], [], []>} : vector<64x128xbf16>, vector<128x128xbf16>, vector<64x128xf32> -> vector<64x128xf32>
    %c2_55 = arith.constant 2 : index
    %c0_56 = arith.constant 0 : index
    %c0_57 = arith.constant 0 : index
    %62 = vector.load %arg4[%c2_55, %c0_56, %c0_57] : memref<3x128x128xbf16, #tpu.memory_space<vmem>>, vector<1x128x128xbf16>
    %63 = vector.shape_cast %62 : vector<1x128x128xbf16> to vector<128x128xbf16>
    %cst_58 = arith.constant dense<0.000000e+00> : vector<64x128xf32>
    %64 = tpu.matmul %52, %63, %cst_58 {dimension_numbers = #tpu.dot_dimension_numbers<[1], [0], [0], [1], [0, 0, 1, 1], [], []>} : vector<64x128xbf16>, vector<128x128xbf16>, vector<64x128xf32> -> vector<64x128xf32>
    %65 = arith.addf %61, %64 : vector<64x128xf32>
    %c2_59 = arith.constant 2 : index
    %c0_60 = arith.constant 0 : index
    %c0_61 = arith.constant 0 : index
    %66 = vector.load %arg5[%c2_59, %c0_60, %c0_61] : memref<3x1x128xf32, #tpu.memory_space<vmem>>, vector<1x1x128xf32>
    %67 = vector.shape_cast %66 : vector<1x1x128xf32> to vector<1x128xf32>
    %68 = vector.broadcast %67 : vector<1x128xf32> to vector<64x128xf32>
    %69 = arith.mulf %65, %68 : vector<64x128xf32>
    %c2_62 = arith.constant 2 : index
    %c0_63 = arith.constant 0 : index
    %c0_64 = arith.constant 0 : index
    %70 = vector.load %arg6[%c2_62, %c0_63, %c0_64] : memref<3x1x128xf32, #tpu.memory_space<vmem>>, vector<1x1x128xf32>
    %71 = vector.shape_cast %70 : vector<1x1x128xf32> to vector<1x128xf32>
    %72 = vector.broadcast %71 : vector<1x128xf32> to vector<64x128xf32>
    %73 = arith.addf %69, %72 : vector<64x128xf32>
    %c0_65 = arith.constant 0 : index
    %c0_66 = arith.constant 0 : index
    %74 = vector.load %arg7[%c0_65, %c0_66] : memref<64x128xf32, #tpu.memory_space<vmem>>, vector<64x128xf32>
    tpu.vector_store %arg7[%c0_65, %c0_66], %73 {strides = array<i32>} : memref<64x128xf32, #tpu.memory_space<vmem>>, vector<64x128xf32>,
    return
  }
}

</mosaic_0001>

<llo_original>
// kernel: tpu_custom_call.1
$region0: #{tpu_custom_call.1}
  #allocation0 [shape = 'u32[]', space=smem, size = 0x4, offset = 0x4, fixed_abs, tag = 'smem constant byte address 0x4 - core index']
  #allocation1 [shape = 'u32[144,128]{1,0:T(1,128)}', space=vmem, size = 0x12000, scoped, tag = 'internal scratch']
  #allocation2 [shape = 'bf16[64,128]{1,0:T(8,128)(2,1)}', space=vmem, size = 0x4000, scoped, tag = 'scratch operand']
  %s0 = inlined_call_operand.vmem [shape: bf16[64,64], index: 0, kind: input, shape index: {}]
  %s1 = inlined_call_operand.vmem [shape: bf16[64,128], index: 1, kind: input, shape index: {}]
  %s2 = inlined_call_operand.vmem [shape: f32[64,1], index: 2, kind: input, shape index: {}]
  %s3 = inlined_call_operand.hbm [shape: bf16[3,128,128], index: 3, kind: input, shape index: {}]
  %s4 = inlined_call_operand.hbm [shape: bf16[3,128,128], index: 4, kind: input, shape index: {}]
  %s5 = inlined_call_operand.vmem [shape: f32[3,1,128], index: 5, kind: input, shape index: {}]
  %s6 = inlined_call_operand.vmem [shape: f32[3,1,128], index: 6, kind: input, shape index: {}]
  %s7 = inlined_call_operand.hbm [shape: f32[64,128], index: 7, kind: output, shape index: {}]
  %s8 = sld [smem:[#allocation0]]
  $region46: #{tpu_custom_call.1} parent=0
    _
  %s10 = ssub.s32 1, %s8
  %s11 = scalar_select 0, %s10, %s8
  $region1: #{tpu_custom_call.1} parent=0
    #allocation3 [shape = 'u8[98304]{0}', space=vmem, size = 0x18000, scoped, tag = 'input window, operand 3, single buffered']
    #allocation4 [shape = 's32[1]{0}', space=sflag, size = 0x4, scoped, tag = 'scoped memory for tpu_custom_call.1']
    #allocation5 [shape = 's32[1]{0}', space=sflag, size = 0x4, scoped, tag = 'scoped memory for tpu_custom_call.1']
    #allocation6 [shape = 'u8[98304]{0}', space=vmem, size = 0x18000, scoped, tag = 'input window, operand 4, single buffered']
    #allocation7 [shape = 's32[1]{0}', space=sflag, size = 0x4, scoped, tag = 'scoped memory for tpu_custom_call.1']
    #allocation8 [shape = 'u8[32768]{0}', space=vmem, size = 0x8000, scoped, tag = 'output window, operand 0, single buffered']
    %12 = vsyncpa [#allocation4], 0
    %13 = vsyncpa [#allocation7], 0
    %14 = vsyncpa [#allocation5], 0
    // Predicated region
    $region2: #{tpu_custom_call.1} parent=1 // pred_check
      _
    $region3: #{tpu_custom_call.1} parent=1 // pred_check_branch
      %16 = sbr.rel (0) target = $region5
    $region4: #{tpu_custom_call.1} parent=1 // pred_region
      _
    $region5: #{tpu_custom_call.1} parent=1 // pred_fallthru
      _
    // Predicated region
    $region6: #{tpu_custom_call.1} parent=1 // pred_check
      _
    $region7: #{tpu_custom_call.1} parent=1 // pred_check_branch
      %18 = sbr.rel (0) target = $region9
    $region8: #{tpu_custom_call.1} parent=1 // pred_region
      _
    $region9: #{tpu_custom_call.1} parent=1 // pred_fallthru
      _
    // Predicated region
    $region10: #{tpu_custom_call.1} parent=1 // pred_check
      _
    $region11: #{tpu_custom_call.1} parent=1 // pred_check_branch
      %20 = sbr.rel (0) target = $region13
    $region12: #{tpu_custom_call.1} parent=1 // pred_region
      _
    $region13: #{tpu_custom_call.1} parent=1 // pred_fallthru
      _
    // Predicated region
    $region14: #{tpu_custom_call.1} parent=1 // pred_check
      _
    $region15: #{tpu_custom_call.1} parent=1 // pred_check_branch
      %22 = sbr.rel (0) target = $region17
    $region16: #{tpu_custom_call.1} parent=1 // pred_region
      %s24 = ssub.s32 3072, 3072
      %25 = vsyncadd [#allocation4], %s24
      %s26 = sshll.u32 [#allocation3], 4
      %s27 = int_to_ptr.vmem [resolvable:$true] %s26
      %32 = dma.hbm_to_vmem [thread:$0]  %s3, 3072, %s27, [#allocation4], 64, 64, 4
    $region17: #{tpu_custom_call.1} parent=1 // pred_fallthru
      _
    // Predicated region
    $region18: #{tpu_custom_call.1} parent=1 // pred_check
      _
    $region19: #{tpu_custom_call.1} parent=1 // pred_check_branch
      %34 = sbr.rel (0) target = $region21
    $region20: #{tpu_custom_call.1} parent=1 // pred_region
      %s36 = ssub.s32 3072, 3072
      %37 = vsyncadd [#allocation7], %s36
      %s38 = sshll.u32 [#allocation6], 4
      %s39 = int_to_ptr.vmem [resolvable:$true] %s38
      %44 = dma.hbm_to_vmem [thread:$0]  %s4, 3072, %s39, [#allocation7], 64, 64, 4
    $region21: #{tpu_custom_call.1} parent=1 // pred_fallthru
      _
    // Predicated region
    $region22: #{tpu_custom_call.1} parent=1 // pred_check
      _
    $region23: #{tpu_custom_call.1} parent=1 // pred_check_branch
      %46 = sbr.rel (0) target = $region25
    $region24: #{tpu_custom_call.1} parent=1 // pred_region
      _
    $region25: #{tpu_custom_call.1} parent=1 // pred_fallthru
      _
    // Predicated region
    $region26: #{tpu_custom_call.1} parent=1 // pred_check
      _
    $region27: #{tpu_custom_call.1} parent=1 // pred_check_branch
      %48 = sbr.rel (0) target = $region29
    $region28: #{tpu_custom_call.1} parent=1 // pred_region
      _
    $region29: #{tpu_custom_call.1} parent=1 // pred_fallthru
      _
    // Predicated region
    $region30: #{tpu_custom_call.1} parent=1 // pred_check
      _
    $region31: #{tpu_custom_call.1} parent=1 // pred_check_branch
      %50 = sbr.rel (0) target = $region33
    $region32: #{tpu_custom_call.1} parent=1 // pred_region
      %51 = dma.done [#allocation4], 3072
    $region33: #{tpu_custom_call.1} parent=1 // pred_fallthru
      _
    // Predicated region
    $region34: #{tpu_custom_call.1} parent=1 // pred_check
      _
    $region35: #{tpu_custom_call.1} parent=1 // pred_check_branch
      %53 = sbr.rel (0) target = $region37
    $region36: #{tpu_custom_call.1} parent=1 // pred_region
      %54 = dma.done [#allocation7], 3072
    $region37: #{tpu_custom_call.1} parent=1 // pred_fallthru
      _
    %v56 = vld [vmem:[%s1] sm:$0xf]
    %v57 = vld [vmem:[%s1 + $0x4] sm:$0xf]
    %v58 = vld [vmem:[%s1 + $0x8] sm:$0xf]
    %v59 = vld [vmem:[%s1 + $0xc] sm:$0xf]
    %v60 = vld [vmem:[%s1 + $0x10] sm:$0xf]
    %v61 = vld [vmem:[%s1 + $0x14] sm:$0xf]
    %v62 = vld [vmem:[%s1 + $0x18] sm:$0xf]
    %v63 = vld [vmem:[%s1 + $0x1c] sm:$0xf]
    %v64 = vld [vmem:[%s0] sm:$0xf]
    %v65 = vld [vmem:[%s0 + $0x4] sm:$0xf]
    %v66 = vld [vmem:[%s0 + $0x8] sm:$0xf]
    %v67 = vld [vmem:[%s0 + $0xc] sm:$0xf]
    %v68 = vld [vmem:[%s0 + $0x10] sm:$0xf]
    %v69 = vld [vmem:[%s0 + $0x14] sm:$0xf]
    %v70 = vld [vmem:[%s0 + $0x18] sm:$0xf]
    %v71 = vld [vmem:[%s0 + $0x1c] sm:$0xf]
    %v80 = vunpack.c.l.b16 %v64
    %v81 = vunpack.c.l.b16 %v65
    %v82 = vunpack.c.l.b16 %v66
    %v83 = vunpack.c.l.b16 %v67
    %v84 = vunpack.c.l.b16 %v68
    %v85 = vunpack.c.l.b16 %v69
    %v86 = vunpack.c.l.b16 %v70
    %v87 = vunpack.c.l.b16 %v71
    %v88 = vpack.c.b16 %v81, %v80
    %v89 = vpack.c.b16 %v83, %v82
    %v90 = vpack.c.b16 %v85, %v84
    %v91 = vpack.c.b16 %v87, %v86
    %v100 = vunpack.c.l.b16 %v56
    %v101 = vunpack.c.l.b16 %v57
    %v102 = vunpack.c.l.b16 %v58
    %v103 = vunpack.c.l.b16 %v59
    %v104 = vunpack.c.l.b16 %v60
    %v105 = vunpack.c.l.b16 %v61
    %v106 = vunpack.c.l.b16 %v62
    %v107 = vunpack.c.l.b16 %v63
    %v108 = vpack.c.b16 %v101, %v100
    %v109 = vpack.c.b16 %v103, %v102
    %v110 = vpack.c.b16 %v105, %v104
    %v111 = vpack.c.b16 %v107, %v106
    %vm116 = vcmask 523264
    %v118 = vsel %vm116, %v88, 0
    %v121 = vsel %vm116, %v89, 0
    %v124 = vsel %vm116, %v90, 0
    %v127 = vsel %vm116, %v91, 0
    %129 = vmatprep.subr.bf16.mxu0 0
    %130 = vmatpush1.bf16.msra.mxu0 0
    %131 = vmatprep.subr.bf16.mxu0 0
    %132 = vmatpush1.bf16.msra.mxu0 0
    %133 = vmatprep.subr.bf16.mxu0 0
    %134 = vmatpush1.bf16.msra.mxu0 0
    %135 = vmatprep.subr.bf16.mxu0 0
    %136 = vmatpush1.bf16.msra.mxu0 0
    %137 = vmatprep.subr.bf16.mxu0 0
    %138 = vmatpush1.bf16.msra.mxu0 %v111
    %139 = vmatprep.subr.bf16.mxu0 0
    %140 = vmatpush1.bf16.msra.mxu0 %v110
    %141 = vmatprep.subr.bf16.mxu0 0
    %142 = vmatpush1.bf16.msra.mxu0 %v109
    %143 = vmatprep.subr.bf16.mxu0 0
    %144 = vmatpush1.bf16.msra.mxu0 %v108
    %145 = vmatprep.subr.bf16.mxu0 0
    %146 = vmatpush2.bf16.msra.mxu0 0
    %147 = vmatprep.subr.bf16.mxu0 0
    %148 = vmatpush2.bf16.msra.mxu0 0
    %149 = vmatprep.subr.bf16.mxu0 0
    %150 = vmatpush2.bf16.msra.mxu0 0
    %151 = vmatprep.subr.bf16.mxu0 0
    %152 = vmatpush2.bf16.msra.mxu0 0
    %153 = vmatprep.subr.bf16.mxu0 0
    %154 = vmatpush2.bf16.msra.mxu0 0
    %155 = vmatprep.subr.bf16.mxu0 0
    %156 = vmatpush2.bf16.msra.mxu0 0
    %157 = vmatprep.subr.bf16.mxu0 0
    %158 = vmatpush2.bf16.msra.mxu0 0
    %159 = vmatprep.subr.bf16.mxu0 0
    %160 = vmatpush2.bf16.msra.mxu0 0
    %161 = vmatprep.mubr.bf16.mxu0 0
    %162 = vmatmul.mubr.bf16.gmra.mxu0 %v118
    %v163 = vpop.f32.mrf.mxu0
    %v164 = vadd.f32 0.0, %v163
    %v165 = vpop.f32.mrf.mxu0
    %v166 = vpop.f32.mrf.mxu0
    %v167 = vadd.f32 0.0, %v166
    %v168 = vpop.f32.mrf.mxu0
    %169 = vmatprep.mubr.bf16.mxu0 0
    %170 = vmatmul.mubr.bf16.gmra.mxu0 %v121
    %v171 = vpop.f32.mrf.mxu0
    %v172 = vadd.f32 0.0, %v171
    %v173 = vpop.f32.mrf.mxu0
    %v174 = vpop.f32.mrf.mxu0
    %v175 = vadd.f32 0.0, %v174
    %v176 = vpop.f32.mrf.mxu0
    %177 = vmatprep.mubr.bf16.mxu0 0
    %178 = vmatmul.mubr.bf16.gmra.mxu0 %v124
    %v179 = vpop.f32.mrf.mxu0
    %v180 = vadd.f32 0.0, %v179
    %v181 = vpop.f32.mrf.mxu0
    %v182 = vpop.f32.mrf.mxu0
    %v183 = vadd.f32 0.0, %v182
    %v184 = vpop.f32.mrf.mxu0
    %185 = vmatprep.mubr.bf16.mxu0 0
    %186 = vmatmul.mubr.bf16.gmra.mxu0 %v127
    %v187 = vpop.f32.mrf.mxu0
    %v188 = vadd.f32 0.0, %v187
    %v189 = vpop.f32.mrf.mxu0
    %v190 = vpop.f32.mrf.mxu0
    %v191 = vadd.f32 0.0, %v190
    %v192 = vpop.f32.mrf.mxu0
    %193 = vdwg.mxu0
    %v194 = vld [vmem:[%s2] sm:$0xff]
    %v195 = vld [vmem:[%s2 + $0x8] sm:$0xff]
    %v196 = vld [vmem:[%s2 + $0x10] sm:$0xff]
    %v197 = vld [vmem:[%s2 + $0x18] sm:$0xff]
    %v198 = vld [vmem:[%s2 + $0x20] sm:$0xff]
    %v199 = vld [vmem:[%s2 + $0x28] sm:$0xff]
    %v200 = vld [vmem:[%s2 + $0x30] sm:$0xff]
    %v201 = vld [vmem:[%s2 + $0x38] sm:$0xff]
    %203 = vset.pattern.permute.xlu0 0
    %204 = vperm.xlu0 %203, %v194
    %v205 = vpop.permute.xlu0 %204
    %208 = vset.pattern.permute.xlu0 0
    %209 = vperm.xlu0 %208, %v195
    %v210 = vpop.permute.xlu0 %209
    %213 = vset.pattern.permute.xlu0 0
    %214 = vperm.xlu0 %213, %v196
    %v215 = vpop.permute.xlu0 %214
    %218 = vset.pattern.permute.xlu0 0
    %219 = vperm.xlu0 %218, %v197
    %v220 = vpop.permute.xlu0 %219
    %223 = vset.pattern.permute.xlu0 0
    %224 = vperm.xlu0 %223, %v198
    %v225 = vpop.permute.xlu0 %224
    %228 = vset.pattern.permute.xlu0 0
    %229 = vperm.xlu0 %228, %v199
    %v230 = vpop.permute.xlu0 %229
    %233 = vset.pattern.permute.xlu0 0
    %234 = vperm.xlu0 %233, %v200
    %v235 = vpop.permute.xlu0 %234
    %238 = vset.pattern.permute.xlu0 0
    %239 = vperm.xlu0 %238, %v201
    %v240 = vpop.permute.xlu0 %239
    %v242 = vmul.f32 %v164, %v205
    %v243 = vmul.f32 %v167, %v210
    %v244 = vmul.f32 %v172, %v215
    %v245 = vmul.f32 %v175, %v220
    %v246 = vmul.f32 %v180, %v225
    %v247 = vmul.f32 %v183, %v230
    %v248 = vmul.f32 %v188, %v235
    %v249 = vmul.f32 %v191, %v240
    %v250 = vpack.c.bf16 %v243, %v242
    %v251 = vpack.c.bf16 %v245, %v244
    %v252 = vpack.c.bf16 %v247, %v246
    %v253 = vpack.c.bf16 %v249, %v248
    %v254 = vld [vmem:[#allocation3] sm:$0xf]
    %v255 = vld [vmem:[#allocation3 + $0x4] sm:$0xf]
    %v256 = vld [vmem:[#allocation3 + $0x8] sm:$0xf]
    %v257 = vld [vmem:[#allocation3 + $0xc] sm:$0xf]
    %v258 = vld [vmem:[#allocation3 + $0x10] sm:$0xf]
    %v259 = vld [vmem:[#allocation3 + $0x14] sm:$0xf]
    %v260 = vld [vmem:[#allocation3 + $0x18] sm:$0xf]
    %v261 = vld [vmem:[#allocation3 + $0x1c] sm:$0xf]
    %v262 = vld [vmem:[#allocation3 + $0x20] sm:$0xf]
    %v263 = vld [vmem:[#allocation3 + $0x24] sm:$0xf]
    %v264 = vld [vmem:[#allocation3 + $0x28] sm:$0xf]
    %v265 = vld [vmem:[#allocation3 + $0x2c] sm:$0xf]
    %v266 = vld [vmem:[#allocation3 + $0x30] sm:$0xf]
    %v267 = vld [vmem:[#allocation3 + $0x34] sm:$0xf]
    %v268 = vld [vmem:[#allocation3 + $0x38] sm:$0xf]
    %v269 = vld [vmem:[#allocation3 + $0x3c] sm:$0xf]
    %v270 = vld [vmem:[#allocation6] sm:$0xf]
    %v271 = vld [vmem:[#allocation6 + $0x4] sm:$0xf]
    %v272 = vld [vmem:[#allocation6 + $0x8] sm:$0xf]
    %v273 = vld [vmem:[#allocation6 + $0xc] sm:$0xf]
    %v274 = vld [vmem:[#allocation6 + $0x10] sm:$0xf]
    %v275 = vld [vmem:[#allocation6 + $0x14] sm:$0xf]
    %v276 = vld [vmem:[#allocation6 + $0x18] sm:$0xf]
    %v277 = vld [vmem:[#allocation6 + $0x1c] sm:$0xf]
    %v278 = vld [vmem:[#allocation6 + $0x20] sm:$0xf]
    %v279 = vld [vmem:[#allocation6 + $0x24] sm:$0xf]
    %v280 = vld [vmem:[#allocation6 + $0x28] sm:$0xf]
    %v281 = vld [vmem:[#allocation6 + $0x2c] sm:$0xf]
    %v282 = vld [vmem:[#allocation6 + $0x30] sm:$0xf]
    %v283 = vld [vmem:[#allocation6 + $0x34] sm:$0xf]
    %v284 = vld [vmem:[#allocation6 + $0x38] sm:$0xf]
    %v285 = vld [vmem:[#allocation6 + $0x3c] sm:$0xf]
    %v302 = vunpack.c.l.b16 %v270
    %v303 = vunpack.c.l.b16 %v271
    %v304 = vunpack.c.l.b16 %v272
    %v305 = vunpack.c.l.b16 %v273
    %v306 = vunpack.c.l.b16 %v274
    %v307 = vunpack.c.l.b16 %v275
    %v308 = vunpack.c.l.b16 %v276
    %v309 = vunpack.c.l.b16 %v277
    %v310 = vunpack.c.l.b16 %v278
    %v311 = vunpack.c.l.b16 %v279
    %v312 = vunpack.c.l.b16 %v280
    %v313 = vunpack.c.l.b16 %v281
    %v314 = vunpack.c.l.b16 %v282
    %v315 = vunpack.c.l.b16 %v283
    %v316 = vunpack.c.l.b16 %v284
    %v317 = vunpack.c.l.b16 %v285
    %v318 = vpack.c.b16 %v303, %v302
    %v319 = vpack.c.b16 %v305, %v304
    %v320 = vpack.c.b16 %v307, %v306
    %v321 = vpack.c.b16 %v309, %v308
    %v322 = vpack.c.b16 %v311, %v310
    %v323 = vpack.c.b16 %v313, %v312
    %v324 = vpack.c.b16 %v315, %v314
    %v325 = vpack.c.b16 %v317, %v316
    %334 = vmatprep.subr.bf16.mxu0 0
    %335 = vmatpush1.bf16.msra.mxu0 %v325
    %336 = vmatprep.subr.bf16.mxu0 0
    %337 = vmatpush1.bf16.msra.mxu0 %v324
    %338 = vmatprep.subr.bf16.mxu0 0
    %339 = vmatpush1.bf16.msra.mxu0 %v323
    %340 = vmatprep.subr.bf16.mxu0 0
    %341 = vmatpush1.bf16.msra.mxu0 %v322
    %342 = vmatprep.subr.bf16.mxu0 0
    %343 = vmatpush1.bf16.msra.mxu0 %v321
    %344 = vmatprep.subr.bf16.mxu0 0
    %345 = vmatpush1.bf16.msra.mxu0 %v320
    %346 = vmatprep.subr.bf16.mxu0 0
    %347 = vmatpush1.bf16.msra.mxu0 %v319
    %348 = vmatprep.subr.bf16.mxu0 0
    %349 = vmatpush1.bf16.msra.mxu0 %v318
    %350 = vmatprep.subr.bf16.mxu0 0
    %351 = vmatpush2.bf16.msra.mxu0 0
    %352 = vmatprep.subr.bf16.mxu0 0
    %353 = vmatpush2.bf16.msra.mxu0 0
    %354 = vmatprep.subr.bf16.mxu0 0
    %355 = vmatpush2.bf16.msra.mxu0 0
    %356 = vmatprep.subr.bf16.mxu0 0
    %357 = vmatpush2.bf16.msra.mxu0 0
    %358 = vmatprep.subr.bf16.mxu0 0
    %359 = vmatpush2.bf16.msra.mxu0 0
    %360 = vmatprep.subr.bf16.mxu0 0
    %361 = vmatpush2.bf16.msra.mxu0 0
    %362 = vmatprep.subr.bf16.mxu0 0
    %363 = vmatpush2.bf16.msra.mxu0 0
    %364 = vmatprep.subr.bf16.mxu0 0
    %365 = vmatpush2.bf16.msra.mxu0 0
    %366 = vmatprep.mubr.bf16.mxu0 0
    %367 = vmatmul.mubr.bf16.gmra.mxu0 %v108
    %v368 = vpop.f32.mrf.mxu0
    %v369 = vadd.f32 0.0, %v368
    %v370 = vpop.f32.mrf.mxu0
    %v371 = vpop.f32.mrf.mxu0
    %v372 = vadd.f32 0.0, %v371
    %v373 = vpop.f32.mrf.mxu0
    %374 = vmatprep.mubr.bf16.mxu0 0
    %375 = vmatmul.mubr.bf16.gmra.mxu0 %v109
    %v376 = vpop.f32.mrf.mxu0
    %v377 = vadd.f32 0.0, %v376
    %v378 = vpop.f32.mrf.mxu0
    %v379 = vpop.f32.mrf.mxu0
    %v380 = vadd.f32 0.0, %v379
    %v381 = vpop.f32.mrf.mxu0
    %382 = vmatprep.mubr.bf16.mxu0 0
    %383 = vmatmul.mubr.bf16.gmra.mxu0 %v110
    %v384 = vpop.f32.mrf.mxu0
    %v385 = vadd.f32 0.0, %v384
    %v386 = vpop.f32.mrf.mxu0
    %v387 = vpop.f32.mrf.mxu0
    %v388 = vadd.f32 0.0, %v387
    %v389 = vpop.f32.mrf.mxu0
    %390 = vmatprep.mubr.bf16.mxu0 0
    %391 = vmatmul.mubr.bf16.gmra.mxu0 %v111
    %v392 = vpop.f32.mrf.mxu0
    %v393 = vadd.f32 0.0, %v392
    %v394 = vpop.f32.mrf.mxu0
    %v395 = vpop.f32.mrf.mxu0
    %v396 = vadd.f32 0.0, %v395
    %v397 = vpop.f32.mrf.mxu0
    %398 = vdwg.mxu0
    %v415 = vunpack.c.l.b16 %v254
    %v416 = vunpack.c.l.b16 %v255
    %v417 = vunpack.c.l.b16 %v256
    %v418 = vunpack.c.l.b16 %v257
    %v419 = vunpack.c.l.b16 %v258
    %v420 = vunpack.c.l.b16 %v259
    %v421 = vunpack.c.l.b16 %v260
    %v422 = vunpack.c.l.b16 %v261
    %v423 = vunpack.c.l.b16 %v262
    %v424 = vunpack.c.l.b16 %v263
    %v425 = vunpack.c.l.b16 %v264
    %v426 = vunpack.c.l.b16 %v265
    %v427 = vunpack.c.l.b16 %v266
    %v428 = vunpack.c.l.b16 %v267
    %v429 = vunpack.c.l.b16 %v268
    %v430 = vunpack.c.l.b16 %v269
    %v431 = vpack.c.b16 %v416, %v415
    %v432 = vpack.c.b16 %v418, %v417
    %v433 = vpack.c.b16 %v420, %v419
    %v434 = vpack.c.b16 %v422, %v421
    %v435 = vpack.c.b16 %v424, %v423
    %v436 = vpack.c.b16 %v426, %v425
    %v437 = vpack.c.b16 %v428, %v427
    %v438 = vpack.c.b16 %v430, %v429
    %447 = vmatprep.subr.bf16.mxu0 0
    %448 = vmatpush1.bf16.msra.mxu0 %v438
    %449 = vmatprep.subr.bf16.mxu0 0
    %450 = vmatpush1.bf16.msra.mxu0 %v437
    %451 = vmatprep.subr.bf16.mxu0 0
    %452 = vmatpush1.bf16.msra.mxu0 %v436
    %453 = vmatprep.subr.bf16.mxu0 0
    %454 = vmatpush1.bf16.msra.mxu0 %v435
    %455 = vmatprep.subr.bf16.mxu0 0
    %456 = vmatpush1.bf16.msra.mxu0 %v434
    %457 = vmatprep.subr.bf16.mxu0 0
    %458 = vmatpush1.bf16.msra.mxu0 %v433
    %459 = vmatprep.subr.bf16.mxu0 0
    %460 = vmatpush1.bf16.msra.mxu0 %v432
    %461 = vmatprep.subr.bf16.mxu0 0
    %462 = vmatpush1.bf16.msra.mxu0 %v431
    %463 = vmatprep.subr.bf16.mxu0 0
    %464 = vmatpush2.bf16.msra.mxu0 0
    %465 = vmatprep.subr.bf16.mxu0 0
    %466 = vmatpush2.bf16.msra.mxu0 0
    %467 = vmatprep.subr.bf16.mxu0 0
    %468 = vmatpush2.bf16.msra.mxu0 0
    %469 = vmatprep.subr.bf16.mxu0 0
    %470 = vmatpush2.bf16.msra.mxu0 0
    %471 = vmatprep.subr.bf16.mxu0 0
    %472 = vmatpush2.bf16.msra.mxu0 0
    %473 = vmatprep.subr.bf16.mxu0 0
    %474 = vmatpush2.bf16.msra.mxu0 0
    %475 = vmatprep.subr.bf16.mxu0 0
    %476 = vmatpush2.bf16.msra.mxu0 0
    %477 = vmatprep.subr.bf16.mxu0 0
    %478 = vmatpush2.bf16.msra.mxu0 0
    %479 = vmatprep.mubr.bf16.mxu0 0
    %480 = vmatmul.mubr.bf16.gmra.mxu0 %v250
    %v481 = vpop.f32.mrf.mxu0
    %v482 = vadd.f32 %v369, %v481
    %v483 = vpop.f32.mrf.mxu0
    %v484 = vpop.f32.mrf.mxu0
    %v485 = vadd.f32 %v372, %v484
    %v486 = vpop.f32.mrf.mxu0
    %487 = vmatprep.mubr.bf16.mxu0 0
    %488 = vmatmul.mubr.bf16.gmra.mxu0 %v251
    %v489 = vpop.f32.mrf.mxu0
    %v490 = vadd.f32 %v377, %v489
    %v491 = vpop.f32.mrf.mxu0
    %v492 = vpop.f32.mrf.mxu0
    %v493 = vadd.f32 %v380, %v492
    %v494 = vpop.f32.mrf.mxu0
    %495 = vmatprep.mubr.bf16.mxu0 0
    %496 = vmatmul.mubr.bf16.gmra.mxu0 %v252
    %v497 = vpop.f32.mrf.mxu0
    %v498 = vadd.f32 %v385, %v497
    %v499 = vpop.f32.mrf.mxu0
    %v500 = vpop.f32.mrf.mxu0
    %v501 = vadd.f32 %v388, %v500
    %v502 = vpop.f32.mrf.mxu0
    %503 = vmatprep.mubr.bf16.mxu0 0
    %504 = vmatmul.mubr.bf16.gmra.mxu0 %v253
    %v505 = vpop.f32.mrf.mxu0
    %v506 = vadd.f32 %v393, %v505
    %v507 = vpop.f32.mrf.mxu0
    %v508 = vpop.f32.mrf.mxu0
    %v509 = vadd.f32 %v396, %v508
    %v510 = vpop.f32.mrf.mxu0
    %511 = vdwg.mxu0
    %v512 = vld [vmem:[%s5] sm:$0x1]
    %v514 = vlaneseq
    %v515 = vshrl.u32 %v514, 7
    %v516 = vsub.s32 0, %v515
    %v517 = vrot.slane %v512, %v516
    %v519 = vmul.f32 %v482, %v517
    %v520 = vmul.f32 %v485, %v517
    %v521 = vmul.f32 %v490, %v517
    %v522 = vmul.f32 %v493, %v517
    %v523 = vmul.f32 %v498, %v517
    %v524 = vmul.f32 %v501, %v517
    %v525 = vmul.f32 %v506, %v517
    %v526 = vmul.f32 %v509, %v517
    %v527 = vld [vmem:[%s6] sm:$0x1]
    %v529 = vlaneseq
    %v530 = vshrl.u32 %v529, 7
    %v531 = vsub.s32 0, %v530
    %v532 = vrot.slane %v527, %v531
    %v534 = vadd.f32 %v519, %v532
    %v535 = vadd.f32 %v520, %v532
    %v536 = vadd.f32 %v521, %v532
    %v537 = vadd.f32 %v522, %v532
    %v538 = vadd.f32 %v523, %v532
    %v539 = vadd.f32 %v524, %v532
    %v540 = vadd.f32 %v525, %v532
    %v541 = vadd.f32 %v526, %v532
    %v542 = vmax.f32 %v534, 0.0
    %v543 = vmax.f32 %v535, 0.0
    %v544 = vmax.f32 %v536, 0.0
    %v545 = vmax.f32 %v537, 0.0
    %v546 = vmax.f32 %v538, 0.0
    %v547 = vmax.f32 %v539, 0.0
    %v548 = vmax.f32 %v540, 0.0
    %v549 = vmax.f32 %v541, 0.0
    %v550 = vpack.c.bf16 %v543, %v542
    %v551 = vpack.c.bf16 %v545, %v544
    %v552 = vpack.c.bf16 %v547, %v546
    %v553 = vpack.c.bf16 %v549, %v548
    %v558 = vunpack.c.l.b16 %v550
    %v559 = vunpack.c.h.b16 %v550
    %v560 = vunpack.c.l.b16 %v551
    %v561 = vunpack.c.h.b16 %v551
    %v562 = vunpack.c.l.b16 %v552
    %v563 = vunpack.c.h.b16 %v552
    %v564 = vunpack.c.l.b16 %v553
    %v565 = vunpack.c.h.b16 %v553
    %v566 = vpack.c.b16 %v558, %v558
    %v567 = vpack.c.b16 %v559, %v559
    %v568 = vpack.c.b16 %v560, %v560
    %v569 = vpack.c.b16 %v561, %v561
    %v570 = vpack.c.b16 %v562, %v562
    %v571 = vpack.c.b16 %v563, %v563
    %v572 = vpack.c.b16 %v564, %v564
    %v573 = vpack.c.b16 %v565, %v565
    %582 = vst [vmem:[#allocation2] sm:$0xf] %v566
    %583 = vst [vmem:[#allocation2 + $0x4] sm:$0xf] %v567
    %584 = vst [vmem:[#allocation2 + $0x8] sm:$0xf] %v568
    %585 = vst [vmem:[#allocation2 + $0xc] sm:$0xf] %v569
    %586 = vst [vmem:[#allocation2 + $0x10] sm:$0xf] %v570
    %587 = vst [vmem:[#allocation2 + $0x14] sm:$0xf] %v571
    %588 = vst [vmem:[#allocation2 + $0x18] sm:$0xf] %v572
    %589 = vst [vmem:[#allocation2 + $0x1c] sm:$0xf] %v573
    %v590 = vld [vmem:[#allocation2] sm:$0xf]
    %v591 = vld [vmem:[#allocation2 + $0x4] sm:$0xf]
    %v592 = vld [vmem:[#allocation2 + $0x8] sm:$0xf]
    %v593 = vld [vmem:[#allocation2 + $0xc] sm:$0xf]
    %v594 = vld [vmem:[#allocation2 + $0x10] sm:$0xf]
    %v595 = vld [vmem:[#allocation2 + $0x14] sm:$0xf]
    %v596 = vld [vmem:[#allocation2 + $0x18] sm:$0xf]
    %v597 = vld [vmem:[#allocation2 + $0x1c] sm:$0xf]
    %v598 = vld [vmem:[%s0] sm:$0xf]
    %v599 = vld [vmem:[%s0 + $0x4] sm:$0xf]
    %v600 = vld [vmem:[%s0 + $0x8] sm:$0xf]
    %v601 = vld [vmem:[%s0 + $0xc] sm:$0xf]
    %v602 = vld [vmem:[%s0 + $0x10] sm:$0xf]
    %v603 = vld [vmem:[%s0 + $0x14] sm:$0xf]
    %v604 = vld [vmem:[%s0 + $0x18] sm:$0xf]
    %v605 = vld [vmem:[%s0 + $0x1c] sm:$0xf]
    %v614 = vunpack.c.l.b16 %v598
    %v615 = vunpack.c.l.b16 %v599
    %v616 = vunpack.c.l.b16 %v600
    %v617 = vunpack.c.l.b16 %v601
    %v618 = vunpack.c.l.b16 %v602
    %v619 = vunpack.c.l.b16 %v603
    %v620 = vunpack.c.l.b16 %v604
    %v621 = vunpack.c.l.b16 %v605
    %v622 = vpack.c.b16 %v615, %v614
    %v623 = vpack.c.b16 %v617, %v616
    %v624 = vpack.c.b16 %v619, %v618
    %v625 = vpack.c.b16 %v621, %v620
    %v634 = vunpack.c.l.b16 %v590
    %v635 = vunpack.c.l.b16 %v591
    %v636 = vunpack.c.l.b16 %v592
    %v637 = vunpack.c.l.b16 %v593
    %v638 = vunpack.c.l.b16 %v594
    %v639 = vunpack.c.l.b16 %v595
    %v640 = vunpack.c.l.b16 %v596
    %v641 = vunpack.c.l.b16 %v597
    %v642 = vpack.c.b16 %v635, %v634
    %v643 = vpack.c.b16 %v637, %v636
    %v644 = vpack.c.b16 %v639, %v638
    %v645 = vpack.c.b16 %v641, %v640
    %v651 = vsel %vm116, %v622, 0
    %v654 = vsel %vm116, %v623, 0
    %v657 = vsel %vm116, %v624, 0
    %v660 = vsel %vm116, %v625, 0
    %662 = vmatprep.subr.bf16.mxu0 0
    %663 = vmatpush1.bf16.msra.mxu0 0
    %664 = vmatprep.subr.bf16.mxu0 0
    %665 = vmatpush1.bf16.msra.mxu0 0
    %666 = vmatprep.subr.bf16.mxu0 0
    %667 = vmatpush1.bf16.msra.mxu0 0
    %668 = vmatprep.subr.bf16.mxu0 0
    %669 = vmatpush1.bf16.msra.mxu0 0
    %670 = vmatprep.subr.bf16.mxu0 0
    %671 = vmatpush1.bf16.msra.mxu0 %v645
    %672 = vmatprep.subr.bf16.mxu0 0
    %673 = vmatpush1.bf16.msra.mxu0 %v644
    %674 = vmatprep.subr.bf16.mxu0 0
    %675 = vmatpush1.bf16.msra.mxu0 %v643
    %676 = vmatprep.subr.bf16.mxu0 0
    %677 = vmatpush1.bf16.msra.mxu0 %v642
    %678 = vmatprep.subr.bf16.mxu0 0
    %679 = vmatpush2.bf16.msra.mxu0 0
    %680 = vmatprep.subr.bf16.mxu0 0
    %681 = vmatpush2.bf16.msra.mxu0 0
    %682 = vmatprep.subr.bf16.mxu0 0
    %683 = vmatpush2.bf16.msra.mxu0 0
    %684 = vmatprep.subr.bf16.mxu0 0
    %685 = vmatpush2.bf16.msra.mxu0 0
    %686 = vmatprep.subr.bf16.mxu0 0
    %687 = vmatpush2.bf16.msra.mxu0 0
    %688 = vmatprep.subr.bf16.mxu0 0
    %689 = vmatpush2.bf16.msra.mxu0 0
    %690 = vmatprep.subr.bf16.mxu0 0
    %691 = vmatpush2.bf16.msra.mxu0 0
    %692 = vmatprep.subr.bf16.mxu0 0
    %693 = vmatpush2.bf16.msra.mxu0 0
    %694 = vmatprep.mubr.bf16.mxu0 0
    %695 = vmatmul.mubr.bf16.gmra.mxu0 %v651
    %v696 = vpop.f32.mrf.mxu0
    %v697 = vadd.f32 0.0, %v696
    %v698 = vpop.f32.mrf.mxu0
    %v699 = vpop.f32.mrf.mxu0
    %v700 = vadd.f32 0.0, %v699
    %v701 = vpop.f32.mrf.mxu0
    %702 = vmatprep.mubr.bf16.mxu0 0
    %703 = vmatmul.mubr.bf16.gmra.mxu0 %v654
    %v704 = vpop.f32.mrf.mxu0
    %v705 = vadd.f32 0.0, %v704
    %v706 = vpop.f32.mrf.mxu0
    %v707 = vpop.f32.mrf.mxu0
    %v708 = vadd.f32 0.0, %v707
    %v709 = vpop.f32.mrf.mxu0
    %710 = vmatprep.mubr.bf16.mxu0 0
    %711 = vmatmul.mubr.bf16.gmra.mxu0 %v657
    %v712 = vpop.f32.mrf.mxu0
    %v713 = vadd.f32 0.0, %v712
    %v714 = vpop.f32.mrf.mxu0
    %v715 = vpop.f32.mrf.mxu0
    %v716 = vadd.f32 0.0, %v715
    %v717 = vpop.f32.mrf.mxu0
    %718 = vmatprep.mubr.bf16.mxu0 0
    %719 = vmatmul.mubr.bf16.gmra.mxu0 %v660
    %v720 = vpop.f32.mrf.mxu0
    %v721 = vadd.f32 0.0, %v720
    %v722 = vpop.f32.mrf.mxu0
    %v723 = vpop.f32.mrf.mxu0
    %v724 = vadd.f32 0.0, %v723
    %v725 = vpop.f32.mrf.mxu0
    %726 = vdwg.mxu0
    %v727 = vld [vmem:[%s2] sm:$0xff]
    %v728 = vld [vmem:[%s2 + $0x8] sm:$0xff]
    %v729 = vld [vmem:[%s2 + $0x10] sm:$0xff]
    %v730 = vld [vmem:[%s2 + $0x18] sm:$0xff]
    %v731 = vld [vmem:[%s2 + $0x20] sm:$0xff]
    %v732 = vld [vmem:[%s2 + $0x28] sm:$0xff]
    %v733 = vld [vmem:[%s2 + $0x30] sm:$0xff]
    %v734 = vld [vmem:[%s2 + $0x38] sm:$0xff]
    %736 = vset.pattern.permute.xlu0 0
    %737 = vperm.xlu0 %736, %v727
    %v738 = vpop.permute.xlu0 %737
    %741 = vset.pattern.permute.xlu0 0
    %742 = vperm.xlu0 %741, %v728
    %v743 = vpop.permute.xlu0 %742
    %746 = vset.pattern.permute.xlu0 0
    %747 = vperm.xlu0 %746, %v729
    %v748 = vpop.permute.xlu0 %747
    %751 = vset.pattern.permute.xlu0 0
    %752 = vperm.xlu0 %751, %v730
    %v753 = vpop.permute.xlu0 %752
    %756 = vset.pattern.permute.xlu0 0
    %757 = vperm.xlu0 %756, %v731
    %v758 = vpop.permute.xlu0 %757
    %761 = vset.pattern.permute.xlu0 0
    %762 = vperm.xlu0 %761, %v732
    %v763 = vpop.permute.xlu0 %762
    %766 = vset.pattern.permute.xlu0 0
    %767 = vperm.xlu0 %766, %v733
    %v768 = vpop.permute.xlu0 %767
    %771 = vset.pattern.permute.xlu0 0
    %772 = vperm.xlu0 %771, %v734
    %v773 = vpop.permute.xlu0 %772
    %v775 = vmul.f32 %v697, %v738
    %v776 = vmul.f32 %v700, %v743
    %v777 = vmul.f32 %v705, %v748
    %v778 = vmul.f32 %v708, %v753
    %v779 = vmul.f32 %v713, %v758
    %v780 = vmul.f32 %v716, %v763
    %v781 = vmul.f32 %v721, %v768
    %v782 = vmul.f32 %v724, %v773
    %v783 = vpack.c.bf16 %v776, %v775
    %v784 = vpack.c.bf16 %v778, %v777
    %v785 = vpack.c.bf16 %v780, %v779
    %v786 = vpack.c.bf16 %v782, %v781
    %s787 = scalar_lea.vmem [#allocation3], 64
    %v788 = vld [vmem:[%s787] sm:$0xf]
    %v789 = vld [vmem:[%s787 + $0x4] sm:$0xf]
    %v790 = vld [vmem:[%s787 + $0x8] sm:$0xf]
    %v791 = vld [vmem:[%s787 + $0xc] sm:$0xf]
    %v792 = vld [vmem:[%s787 + $0x10] sm:$0xf]
    %v793 = vld [vmem:[%s787 + $0x14] sm:$0xf]
    %v794 = vld [vmem:[%s787 + $0x18] sm:$0xf]
    %v795 = vld [vmem:[%s787 + $0x1c] sm:$0xf]
    %v796 = vld [vmem:[%s787 + $0x20] sm:$0xf]
    %v797 = vld [vmem:[%s787 + $0x24] sm:$0xf]
    %v798 = vld [vmem:[%s787 + $0x28] sm:$0xf]
    %v799 = vld [vmem:[%s787 + $0x2c] sm:$0xf]
    %v800 = vld [vmem:[%s787 + $0x30] sm:$0xf]
    %v801 = vld [vmem:[%s787 + $0x34] sm:$0xf]
    %v802 = vld [vmem:[%s787 + $0x38] sm:$0xf]
    %v803 = vld [vmem:[%s787 + $0x3c] sm:$0xf]
    %s804 = scalar_lea.vmem [#allocation6], 64
    %v805 = vld [vmem:[%s804] sm:$0xf]
    %v806 = vld [vmem:[%s804 + $0x4] sm:$0xf]
    %v807 = vld [vmem:[%s804 + $0x8] sm:$0xf]
    %v808 = vld [vmem:[%s804 + $0xc] sm:$0xf]
    %v809 = vld [vmem:[%s804 + $0x10] sm:$0xf]
    %v810 = vld [vmem:[%s804 + $0x14] sm:$0xf]
    %v811 = vld [vmem:[%s804 + $0x18] sm:$0xf]
    %v812 = vld [vmem:[%s804 + $0x1c] sm:$0xf]
    %v813 = vld [vmem:[%s804 + $0x20] sm:$0xf]
    %v814 = vld [vmem:[%s804 + $0x24] sm:$0xf]
    %v815 = vld [vmem:[%s804 + $0x28] sm:$0xf]
    %v816 = vld [vmem:[%s804 + $0x2c] sm:$0xf]
    %v817 = vld [vmem:[%s804 + $0x30] sm:$0xf]
    %v818 = vld [vmem:[%s804 + $0x34] sm:$0xf]
    %v819 = vld [vmem:[%s804 + $0x38] sm:$0xf]
    %v820 = vld [vmem:[%s804 + $0x3c] sm:$0xf]
    %v837 = vunpack.c.l.b16 %v805
    %v838 = vunpack.c.l.b16 %v806
    %v839 = vunpack.c.l.b16 %v807
    %v840 = vunpack.c.l.b16 %v808
    %v841 = vunpack.c.l.b16 %v809
    %v842 = vunpack.c.l.b16 %v810
    %v843 = vunpack.c.l.b16 %v811
    %v844 = vunpack.c.l.b16 %v812
    %v845 = vunpack.c.l.b16 %v813
    %v846 = vunpack.c.l.b16 %v814
    %v847 = vunpack.c.l.b16 %v815
    %v848 = vunpack.c.l.b16 %v816
    %v849 = vunpack.c.l.b16 %v817
    %v850 = vunpack.c.l.b16 %v818
    %v851 = vunpack.c.l.b16 %v819
    %v852 = vunpack.c.l.b16 %v820
    %v853 = vpack.c.b16 %v838, %v837
    %v854 = vpack.c.b16 %v840, %v839
    %v855 = vpack.c.b16 %v842, %v841
    %v856 = vpack.c.b16 %v844, %v843
    %v857 = vpack.c.b16 %v846, %v845
    %v858 = vpack.c.b16 %v848, %v847
    %v859 = vpack.c.b16 %v850, %v849
    %v860 = vpack.c.b16 %v852, %v851
    %869 = vmatprep.subr.bf16.mxu0 0
    %870 = vmatpush1.bf16.msra.mxu0 %v860
    %871 = vmatprep.subr.bf16.mxu0 0
    %872 = vmatpush1.bf16.msra.mxu0 %v859
    %873 = vmatprep.subr.bf16.mxu0 0
    %874 = vmatpush1.bf16.msra.mxu0 %v858
    %875 = vmatprep.subr.bf16.mxu0 0
    %876 = vmatpush1.bf16.msra.mxu0 %v857
    %877 = vmatprep.subr.bf16.mxu0 0
    %878 = vmatpush1.bf16.msra.mxu0 %v856
    %879 = vmatprep.subr.bf16.mxu0 0
    %880 = vmatpush1.bf16.msra.mxu0 %v855
    %881 = vmatprep.subr.bf16.mxu0 0
    %882 = vmatpush1.bf16.msra.mxu0 %v854
    %883 = vmatprep.subr.bf16.mxu0 0
    %884 = vmatpush1.bf16.msra.mxu0 %v853
    %885 = vmatprep.subr.bf16.mxu0 0
    %886 = vmatpush2.bf16.msra.mxu0 0
    %887 = vmatprep.subr.bf16.mxu0 0
    %888 = vmatpush2.bf16.msra.mxu0 0
    %889 = vmatprep.subr.bf16.mxu0 0
    %890 = vmatpush2.bf16.msra.mxu0 0
    %891 = vmatprep.subr.bf16.mxu0 0
    %892 = vmatpush2.bf16.msra.mxu0 0
    %893 = vmatprep.subr.bf16.mxu0 0
    %894 = vmatpush2.bf16.msra.mxu0 0
    %895 = vmatprep.subr.bf16.mxu0 0
    %896 = vmatpush2.bf16.msra.mxu0 0
    %897 = vmatprep.subr.bf16.mxu0 0
    %898 = vmatpush2.bf16.msra.mxu0 0
    %899 = vmatprep.subr.bf16.mxu0 0
    %900 = vmatpush2.bf16.msra.mxu0 0
    %901 = vmatprep.mubr.bf16.mxu0 0
    %902 = vmatmul.mubr.bf16.gmra.mxu0 %v642
    %v903 = vpop.f32.mrf.mxu0
    %v904 = vadd.f32 0.0, %v903
    %v905 = vpop.f32.mrf.mxu0
    %v906 = vpop.f32.mrf.mxu0
    %v907 = vadd.f32 0.0, %v906
    %v908 = vpop.f32.mrf.mxu0
    %909 = vmatprep.mubr.bf16.mxu0 0
    %910 = vmatmul.mubr.bf16.gmra.mxu0 %v643
    %v911 = vpop.f32.mrf.mxu0
    %v912 = vadd.f32 0.0, %v911
    %v913 = vpop.f32.mrf.mxu0
    %v914 = vpop.f32.mrf.mxu0
    %v915 = vadd.f32 0.0, %v914
    %v916 = vpop.f32.mrf.mxu0
    %917 = vmatprep.mubr.bf16.mxu0 0
    %918 = vmatmul.mubr.bf16.gmra.mxu0 %v644
    %v919 = vpop.f32.mrf.mxu0
    %v920 = vadd.f32 0.0, %v919
    %v921 = vpop.f32.mrf.mxu0
    %v922 = vpop.f32.mrf.mxu0
    %v923 = vadd.f32 0.0, %v922
    %v924 = vpop.f32.mrf.mxu0
    %925 = vmatprep.mubr.bf16.mxu0 0
    %926 = vmatmul.mubr.bf16.gmra.mxu0 %v645
    %v927 = vpop.f32.mrf.mxu0
    %v928 = vadd.f32 0.0, %v927
    %v929 = vpop.f32.mrf.mxu0
    %v930 = vpop.f32.mrf.mxu0
    %v931 = vadd.f32 0.0, %v930
    %v932 = vpop.f32.mrf.mxu0
    %933 = vdwg.mxu0
    %v950 = vunpack.c.l.b16 %v788
    %v951 = vunpack.c.l.b16 %v789
    %v952 = vunpack.c.l.b16 %v790
    %v953 = vunpack.c.l.b16 %v791
    %v954 = vunpack.c.l.b16 %v792
    %v955 = vunpack.c.l.b16 %v793
    %v956 = vunpack.c.l.b16 %v794
    %v957 = vunpack.c.l.b16 %v795
    %v958 = vunpack.c.l.b16 %v796
    %v959 = vunpack.c.l.b16 %v797
    %v960 = vunpack.c.l.b16 %v798
    %v961 = vunpack.c.l.b16 %v799
    %v962 = vunpack.c.l.b16 %v800
    %v963 = vunpack.c.l.b16 %v801
    %v964 = vunpack.c.l.b16 %v802
    %v965 = vunpack.c.l.b16 %v803
    %v966 = vpack.c.b16 %v951, %v950
    %v967 = vpack.c.b16 %v953, %v952
    %v968 = vpack.c.b16 %v955, %v954
    %v969 = vpack.c.b16 %v957, %v956
    %v970 = vpack.c.b16 %v959, %v958
    %v971 = vpack.c.b16 %v961, %v960
    %v972 = vpack.c.b16 %v963, %v962
    %v973 = vpack.c.b16 %v965, %v964
    %982 = vmatprep.subr.bf16.mxu0 0
    %983 = vmatpush1.bf16.msra.mxu0 %v973
    %984 = vmatprep.subr.bf16.mxu0 0
    %985 = vmatpush1.bf16.msra.mxu0 %v972
    %986 = vmatprep.subr.bf16.mxu0 0
    %987 = vmatpush1.bf16.msra.mxu0 %v971
    %988 = vmatprep.subr.bf16.mxu0 0
    %989 = vmatpush1.bf16.msra.mxu0 %v970
    %990 = vmatprep.subr.bf16.mxu0 0
    %991 = vmatpush1.bf16.msra.mxu0 %v969
    %992 = vmatprep.subr.bf16.mxu0 0
    %993 = vmatpush1.bf16.msra.mxu0 %v968
    %994 = vmatprep.subr.bf16.mxu0 0
    %995 = vmatpush1.bf16.msra.mxu0 %v967
    %996 = vmatprep.subr.bf16.mxu0 0
    %997 = vmatpush1.bf16.msra.mxu0 %v966
    %998 = vmatprep.subr.bf16.mxu0 0
    %999 = vmatpush2.bf16.msra.mxu0 0
    %1000 = vmatprep.subr.bf16.mxu0 0
    %1001 = vmatpush2.bf16.msra.mxu0 0
    %1002 = vmatprep.subr.bf16.mxu0 0
    %1003 = vmatpush2.bf16.msra.mxu0 0
    %1004 = vmatprep.subr.bf16.mxu0 0
    %1005 = vmatpush2.bf16.msra.mxu0 0
    %1006 = vmatprep.subr.bf16.mxu0 0
    %1007 = vmatpush2.bf16.msra.mxu0 0
    %1008 = vmatprep.subr.bf16.mxu0 0
    %1009 = vmatpush2.bf16.msra.mxu0 0
    %1010 = vmatprep.subr.bf16.mxu0 0
    %1011 = vmatpush2.bf16.msra.mxu0 0
    %1012 = vmatprep.subr.bf16.mxu0 0
    %1013 = vmatpush2.bf16.msra.mxu0 0
    %1014 = vmatprep.mubr.bf16.mxu0 0
    %1015 = vmatmul.mubr.bf16.gmra.mxu0 %v783
    %v1016 = vpop.f32.mrf.mxu0
    %v1017 = vadd.f32 %v904, %v1016
    %v1018 = vpop.f32.mrf.mxu0
    %v1019 = vpop.f32.mrf.mxu0
    %v1020 = vadd.f32 %v907, %v1019
    %v1021 = vpop.f32.mrf.mxu0
    %1022 = vmatprep.mubr.bf16.mxu0 0
    %1023 = vmatmul.mubr.bf16.gmra.mxu0 %v784
    %v1024 = vpop.f32.mrf.mxu0
    %v1025 = vadd.f32 %v912, %v1024
    %v1026 = vpop.f32.mrf.mxu0
    %v1027 = vpop.f32.mrf.mxu0
    %v1028 = vadd.f32 %v915, %v1027
    %v1029 = vpop.f32.mrf.mxu0
    %1030 = vmatprep.mubr.bf16.mxu0 0
    %1031 = vmatmul.mubr.bf16.gmra.mxu0 %v785
    %v1032 = vpop.f32.mrf.mxu0
    %v1033 = vadd.f32 %v920, %v1032
    %v1034 = vpop.f32.mrf.mxu0
    %v1035 = vpop.f32.mrf.mxu0
    %v1036 = vadd.f32 %v923, %v1035
    %v1037 = vpop.f32.mrf.mxu0
    %1038 = vmatprep.mubr.bf16.mxu0 0
    %1039 = vmatmul.mubr.bf16.gmra.mxu0 %v786
    %v1040 = vpop.f32.mrf.mxu0
    %v1041 = vadd.f32 %v928, %v1040
    %v1042 = vpop.f32.mrf.mxu0
    %v1043 = vpop.f32.mrf.mxu0
    %v1044 = vadd.f32 %v931, %v1043
    %v1045 = vpop.f32.mrf.mxu0
    %1046 = vdwg.mxu0
    %s1047 = scalar_lea.vmem %s5, 1
    %v1048 = vld [vmem:[%s1047] sm:$0x1]
    %v1050 = vlaneseq
    %v1051 = vshrl.u32 %v1050, 7
    %v1052 = vsub.s32 0, %v1051
    %v1053 = vrot.slane %v1048, %v1052
    %v1055 = vmul.f32 %v1017, %v1053
    %v1056 = vmul.f32 %v1020, %v1053
    %v1057 = vmul.f32 %v1025, %v1053
    %v1058 = vmul.f32 %v1028, %v1053
    %v1059 = vmul.f32 %v1033, %v1053
    %v1060 = vmul.f32 %v1036, %v1053
    %v1061 = vmul.f32 %v1041, %v1053
    %v1062 = vmul.f32 %v1044, %v1053
    %s1063 = scalar_lea.vmem %s6, 1
    %v1064 = vld [vmem:[%s1063] sm:$0x1]
    %v1066 = vlaneseq
    %v1067 = vshrl.u32 %v1066, 7
    %v1068 = vsub.s32 0, %v1067
    %v1069 = vrot.slane %v1064, %v1068
    %v1071 = vadd.f32 %v1055, %v1069
    %v1072 = vadd.f32 %v1056, %v1069
    %v1073 = vadd.f32 %v1057, %v1069
    %v1074 = vadd.f32 %v1058, %v1069
    %v1075 = vadd.f32 %v1059, %v1069
    %v1076 = vadd.f32 %v1060, %v1069
    %v1077 = vadd.f32 %v1061, %v1069
    %v1078 = vadd.f32 %v1062, %v1069
    %v1079 = vmax.f32 %v1071, 0.0
    %v1080 = vmax.f32 %v1072, 0.0
    %v1081 = vmax.f32 %v1073, 0.0
    %v1082 = vmax.f32 %v1074, 0.0
    %v1083 = vmax.f32 %v1075, 0.0
    %v1084 = vmax.f32 %v1076, 0.0
    %v1085 = vmax.f32 %v1077, 0.0
    %v1086 = vmax.f32 %v1078, 0.0
    %v1087 = vpack.c.bf16 %v1080, %v1079
    %v1088 = vpack.c.bf16 %v1082, %v1081
    %v1089 = vpack.c.bf16 %v1084, %v1083
    %v1090 = vpack.c.bf16 %v1086, %v1085
    %v1095 = vunpack.c.l.b16 %v1087
    %v1096 = vunpack.c.h.b16 %v1087
    %v1097 = vunpack.c.l.b16 %v1088
    %v1098 = vunpack.c.h.b16 %v1088
    %v1099 = vunpack.c.l.b16 %v1089
    %v1100 = vunpack.c.h.b16 %v1089
    %v1101 = vunpack.c.l.b16 %v1090
    %v1102 = vunpack.c.h.b16 %v1090
    %v1103 = vpack.c.b16 %v1095, %v1095
    %v1104 = vpack.c.b16 %v1096, %v1096
    %v1105 = vpack.c.b16 %v1097, %v1097
    %v1106 = vpack.c.b16 %v1098, %v1098
    %v1107 = vpack.c.b16 %v1099, %v1099
    %v1108 = vpack.c.b16 %v1100, %v1100
    %v1109 = vpack.c.b16 %v1101, %v1101
    %v1110 = vpack.c.b16 %v1102, %v1102
    %1119 = vst [vmem:[#allocation2] sm:$0xf] %v1103
    %1120 = vst [vmem:[#allocation2 + $0x4] sm:$0xf] %v1104
    %1121 = vst [vmem:[#allocation2 + $0x8] sm:$0xf] %v1105
    %1122 = vst [vmem:[#allocation2 + $0xc] sm:$0xf] %v1106
    %1123 = vst [vmem:[#allocation2 + $0x10] sm:$0xf] %v1107
    %1124 = vst [vmem:[#allocation2 + $0x14] sm:$0xf] %v1108
    %1125 = vst [vmem:[#allocation2 + $0x18] sm:$0xf] %v1109
    %1126 = vst [vmem:[#allocation2 + $0x1c] sm:$0xf] %v1110
    %v1127 = vld [vmem:[#allocation2] sm:$0xf]
    %v1128 = vld [vmem:[#allocation2 + $0x4] sm:$0xf]
    %v1129 = vld [vmem:[#allocation2 + $0x8] sm:$0xf]
    %v1130 = vld [vmem:[#allocation2 + $0xc] sm:$0xf]
    %v1131 = vld [vmem:[#allocation2 + $0x10] sm:$0xf]
    %v1132 = vld [vmem:[#allocation2 + $0x14] sm:$0xf]
    %v1133 = vld [vmem:[#allocation2 + $0x18] sm:$0xf]
    %v1134 = vld [vmem:[#allocation2 + $0x1c] sm:$0xf]
    %v1135 = vld [vmem:[%s0] sm:$0xf]
    %v1136 = vld [vmem:[%s0 + $0x4] sm:$0xf]
    %v1137 = vld [vmem:[%s0 + $0x8] sm:$0xf]
    %v1138 = vld [vmem:[%s0 + $0xc] sm:$0xf]
    %v1139 = vld [vmem:[%s0 + $0x10] sm:$0xf]
    %v1140 = vld [vmem:[%s0 + $0x14] sm:$0xf]
    %v1141 = vld [vmem:[%s0 + $0x18] sm:$0xf]
    %v1142 = vld [vmem:[%s0 + $0x1c] sm:$0xf]
    %v1151 = vunpack.c.l.b16 %v1135
    %v1152 = vunpack.c.l.b16 %v1136
    %v1153 = vunpack.c.l.b16 %v1137
    %v1154 = vunpack.c.l.b16 %v1138
    %v1155 = vunpack.c.l.b16 %v1139
    %v1156 = vunpack.c.l.b16 %v1140
    %v1157 = vunpack.c.l.b16 %v1141
    %v1158 = vunpack.c.l.b16 %v1142
    %v1159 = vpack.c.b16 %v1152, %v1151
    %v1160 = vpack.c.b16 %v1154, %v1153
    %v1161 = vpack.c.b16 %v1156, %v1155
    %v1162 = vpack.c.b16 %v1158, %v1157
    %v1171 = vunpack.c.l.b16 %v1127
    %v1172 = vunpack.c.l.b16 %v1128
    %v1173 = vunpack.c.l.b16 %v1129
    %v1174 = vunpack.c.l.b16 %v1130
    %v1175 = vunpack.c.l.b16 %v1131
    %v1176 = vunpack.c.l.b16 %v1132
    %v1177 = vunpack.c.l.b16 %v1133
    %v1178 = vunpack.c.l.b16 %v1134
    %v1179 = vpack.c.b16 %v1172, %v1171
    %v1180 = vpack.c.b16 %v1174, %v1173
    %v1181 = vpack.c.b16 %v1176, %v1175
    %v1182 = vpack.c.b16 %v1178, %v1177
    %v1188 = vsel %vm116, %v1159, 0
    %v1191 = vsel %vm116, %v1160, 0
    %v1194 = vsel %vm116, %v1161, 0
    %v1197 = vsel %vm116, %v1162, 0
    %1199 = vmatprep.subr.bf16.mxu0 0
    %1200 = vmatpush1.bf16.msra.mxu0 0
    %1201 = vmatprep.subr.bf16.mxu0 0
    %1202 = vmatpush1.bf16.msra.mxu0 0
    %1203 = vmatprep.subr.bf16.mxu0 0
    %1204 = vmatpush1.bf16.msra.mxu0 0
    %1205 = vmatprep.subr.bf16.mxu0 0
    %1206 = vmatpush1.bf16.msra.mxu0 0
    %1207 = vmatprep.subr.bf16.mxu0 0
    %1208 = vmatpush1.bf16.msra.mxu0 %v1182
    %1209 = vmatprep.subr.bf16.mxu0 0
    %1210 = vmatpush1.bf16.msra.mxu0 %v1181
    %1211 = vmatprep.subr.bf16.mxu0 0
    %1212 = vmatpush1.bf16.msra.mxu0 %v1180
    %1213 = vmatprep.subr.bf16.mxu0 0
    %1214 = vmatpush1.bf16.msra.mxu0 %v1179
    %1215 = vmatprep.subr.bf16.mxu0 0
    %1216 = vmatpush2.bf16.msra.mxu0 0
    %1217 = vmatprep.subr.bf16.mxu0 0
    %1218 = vmatpush2.bf16.msra.mxu0 0
    %1219 = vmatprep.subr.bf16.mxu0 0
    %1220 = vmatpush2.bf16.msra.mxu0 0
    %1221 = vmatprep.subr.bf16.mxu0 0
    %1222 = vmatpush2.bf16.msra.mxu0 0
    %1223 = vmatprep.subr.bf16.mxu0 0
    %1224 = vmatpush2.bf16.msra.mxu0 0
    %1225 = vmatprep.subr.bf16.mxu0 0
    %1226 = vmatpush2.bf16.msra.mxu0 0
    %1227 = vmatprep.subr.bf16.mxu0 0
    %1228 = vmatpush2.bf16.msra.mxu0 0
    %1229 = vmatprep.subr.bf16.mxu0 0
    %1230 = vmatpush2.bf16.msra.mxu0 0
    %1231 = vmatprep.mubr.bf16.mxu0 0
    %1232 = vmatmul.mubr.bf16.gmra.mxu0 %v1188
    %v1233 = vpop.f32.mrf.mxu0
    %v1234 = vadd.f32 0.0, %v1233
    %v1235 = vpop.f32.mrf.mxu0
    %v1236 = vpop.f32.mrf.mxu0
    %v1237 = vadd.f32 0.0, %v1236
    %v1238 = vpop.f32.mrf.mxu0
    %1239 = vmatprep.mubr.bf16.mxu0 0
    %1240 = vmatmul.mubr.bf16.gmra.mxu0 %v1191
    %v1241 = vpop.f32.mrf.mxu0
    %v1242 = vadd.f32 0.0, %v1241
    %v1243 = vpop.f32.mrf.mxu0
    %v1244 = vpop.f32.mrf.mxu0
    %v1245 = vadd.f32 0.0, %v1244
    %v1246 = vpop.f32.mrf.mxu0
    %1247 = vmatprep.mubr.bf16.mxu0 0
    %1248 = vmatmul.mubr.bf16.gmra.mxu0 %v1194
    %v1249 = vpop.f32.mrf.mxu0
    %v1250 = vadd.f32 0.0, %v1249
    %v1251 = vpop.f32.mrf.mxu0
    %v1252 = vpop.f32.mrf.mxu0
    %v1253 = vadd.f32 0.0, %v1252
    %v1254 = vpop.f32.mrf.mxu0
    %1255 = vmatprep.mubr.bf16.mxu0 0
    %1256 = vmatmul.mubr.bf16.gmra.mxu0 %v1197
    %v1257 = vpop.f32.mrf.mxu0
    %v1258 = vadd.f32 0.0, %v1257
    %v1259 = vpop.f32.mrf.mxu0
    %v1260 = vpop.f32.mrf.mxu0
    %v1261 = vadd.f32 0.0, %v1260
    %v1262 = vpop.f32.mrf.mxu0
    %1263 = vdwg.mxu0
    %v1264 = vld [vmem:[%s2] sm:$0xff]
    %v1265 = vld [vmem:[%s2 + $0x8] sm:$0xff]
    %v1266 = vld [vmem:[%s2 + $0x10] sm:$0xff]
    %v1267 = vld [vmem:[%s2 + $0x18] sm:$0xff]
    %v1268 = vld [vmem:[%s2 + $0x20] sm:$0xff]
    %v1269 = vld [vmem:[%s2 + $0x28] sm:$0xff]
    %v1270 = vld [vmem:[%s2 + $0x30] sm:$0xff]
    %v1271 = vld [vmem:[%s2 + $0x38] sm:$0xff]
    %1273 = vset.pattern.permute.xlu0 0
    %1274 = vperm.xlu0 %1273, %v1264
    %v1275 = vpop.permute.xlu0 %1274
    %1278 = vset.pattern.permute.xlu0 0
    %1279 = vperm.xlu0 %1278, %v1265
    %v1280 = vpop.permute.xlu0 %1279
    %1283 = vset.pattern.permute.xlu0 0
    %1284 = vperm.xlu0 %1283, %v1266
    %v1285 = vpop.permute.xlu0 %1284
    %1288 = vset.pattern.permute.xlu0 0
    %1289 = vperm.xlu0 %1288, %v1267
    %v1290 = vpop.permute.xlu0 %1289
    %1293 = vset.pattern.permute.xlu0 0
    %1294 = vperm.xlu0 %1293, %v1268
    %v1295 = vpop.permute.xlu0 %1294
    %1298 = vset.pattern.permute.xlu0 0
    %1299 = vperm.xlu0 %1298, %v1269
    %v1300 = vpop.permute.xlu0 %1299
    %1303 = vset.pattern.permute.xlu0 0
    %1304 = vperm.xlu0 %1303, %v1270
    %v1305 = vpop.permute.xlu0 %1304
    %1308 = vset.pattern.permute.xlu0 0
    %1309 = vperm.xlu0 %1308, %v1271
    %v1310 = vpop.permute.xlu0 %1309
    %v1312 = vmul.f32 %v1234, %v1275
    %v1313 = vmul.f32 %v1237, %v1280
    %v1314 = vmul.f32 %v1242, %v1285
    %v1315 = vmul.f32 %v1245, %v1290
    %v1316 = vmul.f32 %v1250, %v1295
    %v1317 = vmul.f32 %v1253, %v1300
    %v1318 = vmul.f32 %v1258, %v1305
    %v1319 = vmul.f32 %v1261, %v1310
    %v1320 = vpack.c.bf16 %v1313, %v1312
    %v1321 = vpack.c.bf16 %v1315, %v1314
    %v1322 = vpack.c.bf16 %v1317, %v1316
    %v1323 = vpack.c.bf16 %v1319, %v1318
    %s1324 = scalar_lea.vmem [#allocation3], 128
    %v1325 = vld [vmem:[%s1324] sm:$0xf]
    %v1326 = vld [vmem:[%s1324 + $0x4] sm:$0xf]
    %v1327 = vld [vmem:[%s1324 + $0x8] sm:$0xf]
    %v1328 = vld [vmem:[%s1324 + $0xc] sm:$0xf]
    %v1329 = vld [vmem:[%s1324 + $0x10] sm:$0xf]
    %v1330 = vld [vmem:[%s1324 + $0x14] sm:$0xf]
    %v1331 = vld [vmem:[%s1324 + $0x18] sm:$0xf]
    %v1332 = vld [vmem:[%s1324 + $0x1c] sm:$0xf]
    %v1333 = vld [vmem:[%s1324 + $0x20] sm:$0xf]
    %v1334 = vld [vmem:[%s1324 + $0x24] sm:$0xf]
    %v1335 = vld [vmem:[%s1324 + $0x28] sm:$0xf]
    %v1336 = vld [vmem:[%s1324 + $0x2c] sm:$0xf]
    %v1337 = vld [vmem:[%s1324 + $0x30] sm:$0xf]
    %v1338 = vld [vmem:[%s1324 + $0x34] sm:$0xf]
    %v1339 = vld [vmem:[%s1324 + $0x38] sm:$0xf]
    %v1340 = vld [vmem:[%s1324 + $0x3c] sm:$0xf]
    %s1341 = scalar_lea.vmem [#allocation6], 128
    %v1342 = vld [vmem:[%s1341] sm:$0xf]
    %v1343 = vld [vmem:[%s1341 + $0x4] sm:$0xf]
    %v1344 = vld [vmem:[%s1341 + $0x8] sm:$0xf]
    %v1345 = vld [vmem:[%s1341 + $0xc] sm:$0xf]
    %v1346 = vld [vmem:[%s1341 + $0x10] sm:$0xf]
    %v1347 = vld [vmem:[%s1341 + $0x14] sm:$0xf]
    %v1348 = vld [vmem:[%s1341 + $0x18] sm:$0xf]
    %v1349 = vld [vmem:[%s1341 + $0x1c] sm:$0xf]
    %v1350 = vld [vmem:[%s1341 + $0x20] sm:$0xf]
    %v1351 = vld [vmem:[%s1341 + $0x24] sm:$0xf]
    %v1352 = vld [vmem:[%s1341 + $0x28] sm:$0xf]
    %v1353 = vld [vmem:[%s1341 + $0x2c] sm:$0xf]
    %v1354 = vld [vmem:[%s1341 + $0x30] sm:$0xf]
    %v1355 = vld [vmem:[%s1341 + $0x34] sm:$0xf]
    %v1356 = vld [vmem:[%s1341 + $0x38] sm:$0xf]
    %v1357 = vld [vmem:[%s1341 + $0x3c] sm:$0xf]
    %v1374 = vunpack.c.l.b16 %v1342
    %v1375 = vunpack.c.l.b16 %v1343
    %v1376 = vunpack.c.l.b16 %v1344
    %v1377 = vunpack.c.l.b16 %v1345
    %v1378 = vunpack.c.l.b16 %v1346
    %v1379 = vunpack.c.l.b16 %v1347
    %v1380 = vunpack.c.l.b16 %v1348
    %v1381 = vunpack.c.l.b16 %v1349
    %v1382 = vunpack.c.l.b16 %v1350
    %v1383 = vunpack.c.l.b16 %v1351
    %v1384 = vunpack.c.l.b16 %v1352
    %v1385 = vunpack.c.l.b16 %v1353
    %v1386 = vunpack.c.l.b16 %v1354
    %v1387 = vunpack.c.l.b16 %v1355
    %v1388 = vunpack.c.l.b16 %v1356
    %v1389 = vunpack.c.l.b16 %v1357
    %v1390 = vpack.c.b16 %v1375, %v1374
    %v1391 = vpack.c.b16 %v1377, %v1376
    %v1392 = vpack.c.b16 %v1379, %v1378
    %v1393 = vpack.c.b16 %v1381, %v1380
    %v1394 = vpack.c.b16 %v1383, %v1382
    %v1395 = vpack.c.b16 %v1385, %v1384
    %v1396 = vpack.c.b16 %v1387, %v1386
    %v1397 = vpack.c.b16 %v1389, %v1388
    %1406 = vmatprep.subr.bf16.mxu0 0
    %1407 = vmatpush1.bf16.msra.mxu0 %v1397
    %1408 = vmatprep.subr.bf16.mxu0 0
    %1409 = vmatpush1.bf16.msra.mxu0 %v1396
    %1410 = vmatprep.subr.bf16.mxu0 0
    %1411 = vmatpush1.bf16.msra.mxu0 %v1395
    %1412 = vmatprep.subr.bf16.mxu0 0
    %1413 = vmatpush1.bf16.msra.mxu0 %v1394
    %1414 = vmatprep.subr.bf16.mxu0 0
    %1415 = vmatpush1.bf16.msra.mxu0 %v1393
    %1416 = vmatprep.subr.bf16.mxu0 0
    %1417 = vmatpush1.bf16.msra.mxu0 %v1392
    %1418 = vmatprep.subr.bf16.mxu0 0
    %1419 = vmatpush1.bf16.msra.mxu0 %v1391
    %1420 = vmatprep.subr.bf16.mxu0 0
    %1421 = vmatpush1.bf16.msra.mxu0 %v1390
    %1422 = vmatprep.subr.bf16.mxu0 0
    %1423 = vmatpush2.bf16.msra.mxu0 0
    %1424 = vmatprep.subr.bf16.mxu0 0
    %1425 = vmatpush2.bf16.msra.mxu0 0
    %1426 = vmatprep.subr.bf16.mxu0 0
    %1427 = vmatpush2.bf16.msra.mxu0 0
    %1428 = vmatprep.subr.bf16.mxu0 0
    %1429 = vmatpush2.bf16.msra.mxu0 0
    %1430 = vmatprep.subr.bf16.mxu0 0
    %1431 = vmatpush2.bf16.msra.mxu0 0
    %1432 = vmatprep.subr.bf16.mxu0 0
    %1433 = vmatpush2.bf16.msra.mxu0 0
    %1434 = vmatprep.subr.bf16.mxu0 0
    %1435 = vmatpush2.bf16.msra.mxu0 0
    %1436 = vmatprep.subr.bf16.mxu0 0
    %1437 = vmatpush2.bf16.msra.mxu0 0
    %1438 = vmatprep.mubr.bf16.mxu0 0
    %1439 = vmatmul.mubr.bf16.gmra.mxu0 %v1179
    %v1440 = vpop.f32.mrf.mxu0
    %v1441 = vadd.f32 0.0, %v1440
    %v1442 = vpop.f32.mrf.mxu0
    %v1443 = vpop.f32.mrf.mxu0
    %v1444 = vadd.f32 0.0, %v1443
    %v1445 = vpop.f32.mrf.mxu0
    %1446 = vmatprep.mubr.bf16.mxu0 0
    %1447 = vmatmul.mubr.bf16.gmra.mxu0 %v1180
    %v1448 = vpop.f32.mrf.mxu0
    %v1449 = vadd.f32 0.0, %v1448
    %v1450 = vpop.f32.mrf.mxu0
    %v1451 = vpop.f32.mrf.mxu0
    %v1452 = vadd.f32 0.0, %v1451
    %v1453 = vpop.f32.mrf.mxu0
    %1454 = vmatprep.mubr.bf16.mxu0 0
    %1455 = vmatmul.mubr.bf16.gmra.mxu0 %v1181
    %v1456 = vpop.f32.mrf.mxu0
    %v1457 = vadd.f32 0.0, %v1456
    %v1458 = vpop.f32.mrf.mxu0
    %v1459 = vpop.f32.mrf.mxu0
    %v1460 = vadd.f32 0.0, %v1459
    %v1461 = vpop.f32.mrf.mxu0
    %1462 = vmatprep.mubr.bf16.mxu0 0
    %1463 = vmatmul.mubr.bf16.gmra.mxu0 %v1182
    %v1464 = vpop.f32.mrf.mxu0
    %v1465 = vadd.f32 0.0, %v1464
    %v1466 = vpop.f32.mrf.mxu0
    %v1467 = vpop.f32.mrf.mxu0
    %v1468 = vadd.f32 0.0, %v1467
    %v1469 = vpop.f32.mrf.mxu0
    %1470 = vdwg.mxu0
    %v1487 = vunpack.c.l.b16 %v1325
    %v1488 = vunpack.c.l.b16 %v1326
    %v1489 = vunpack.c.l.b16 %v1327
    %v1490 = vunpack.c.l.b16 %v1328
    %v1491 = vunpack.c.l.b16 %v1329
    %v1492 = vunpack.c.l.b16 %v1330
    %v1493 = vunpack.c.l.b16 %v1331
    %v1494 = vunpack.c.l.b16 %v1332
    %v1495 = vunpack.c.l.b16 %v1333
    %v1496 = vunpack.c.l.b16 %v1334
    %v1497 = vunpack.c.l.b16 %v1335
    %v1498 = vunpack.c.l.b16 %v1336
    %v1499 = vunpack.c.l.b16 %v1337
    %v1500 = vunpack.c.l.b16 %v1338
    %v1501 = vunpack.c.l.b16 %v1339
    %v1502 = vunpack.c.l.b16 %v1340
    %v1503 = vpack.c.b16 %v1488, %v1487
    %v1504 = vpack.c.b16 %v1490, %v1489
    %v1505 = vpack.c.b16 %v1492, %v1491
    %v1506 = vpack.c.b16 %v1494, %v1493
    %v1507 = vpack.c.b16 %v1496, %v1495
    %v1508 = vpack.c.b16 %v1498, %v1497
    %v1509 = vpack.c.b16 %v1500, %v1499
    %v1510 = vpack.c.b16 %v1502, %v1501
    %1519 = vmatprep.subr.bf16.mxu0 0
    %1520 = vmatpush1.bf16.msra.mxu0 %v1510
    %1521 = vmatprep.subr.bf16.mxu0 0
    %1522 = vmatpush1.bf16.msra.mxu0 %v1509
    %1523 = vmatprep.subr.bf16.mxu0 0
    %1524 = vmatpush1.bf16.msra.mxu0 %v1508
    %1525 = vmatprep.subr.bf16.mxu0 0
    %1526 = vmatpush1.bf16.msra.mxu0 %v1507
    %1527 = vmatprep.subr.bf16.mxu0 0
    %1528 = vmatpush1.bf16.msra.mxu0 %v1506
    %1529 = vmatprep.subr.bf16.mxu0 0
    %1530 = vmatpush1.bf16.msra.mxu0 %v1505
    %1531 = vmatprep.subr.bf16.mxu0 0
    %1532 = vmatpush1.bf16.msra.mxu0 %v1504
    %1533 = vmatprep.subr.bf16.mxu0 0
    %1534 = vmatpush1.bf16.msra.mxu0 %v1503
    %1535 = vmatprep.subr.bf16.mxu0 0
    %1536 = vmatpush2.bf16.msra.mxu0 0
    %1537 = vmatprep.subr.bf16.mxu0 0
    %1538 = vmatpush2.bf16.msra.mxu0 0
    %1539 = vmatprep.subr.bf16.mxu0 0
    %1540 = vmatpush2.bf16.msra.mxu0 0
    %1541 = vmatprep.subr.bf16.mxu0 0
    %1542 = vmatpush2.bf16.msra.mxu0 0
    %1543 = vmatprep.subr.bf16.mxu0 0
    %1544 = vmatpush2.bf16.msra.mxu0 0
    %1545 = vmatprep.subr.bf16.mxu0 0
    %1546 = vmatpush2.bf16.msra.mxu0 0
    %1547 = vmatprep.subr.bf16.mxu0 0
    %1548 = vmatpush2.bf16.msra.mxu0 0
    %1549 = vmatprep.subr.bf16.mxu0 0
    %1550 = vmatpush2.bf16.msra.mxu0 0
    %1551 = vmatprep.mubr.bf16.mxu0 0
    %1552 = vmatmul.mubr.bf16.gmra.mxu0 %v1320
    %v1553 = vpop.f32.mrf.mxu0
    %v1554 = vadd.f32 %v1441, %v1553
    %v1555 = vpop.f32.mrf.mxu0
    %v1556 = vpop.f32.mrf.mxu0
    %v1557 = vadd.f32 %v1444, %v1556
    %v1558 = vpop.f32.mrf.mxu0
    %1559 = vmatprep.mubr.bf16.mxu0 0
    %1560 = vmatmul.mubr.bf16.gmra.mxu0 %v1321
    %v1561 = vpop.f32.mrf.mxu0
    %v1562 = vadd.f32 %v1449, %v1561
    %v1563 = vpop.f32.mrf.mxu0
    %v1564 = vpop.f32.mrf.mxu0
    %v1565 = vadd.f32 %v1452, %v1564
    %v1566 = vpop.f32.mrf.mxu0
    %1567 = vmatprep.mubr.bf16.mxu0 0
    %1568 = vmatmul.mubr.bf16.gmra.mxu0 %v1322
    %v1569 = vpop.f32.mrf.mxu0
    %v1570 = vadd.f32 %v1457, %v1569
    %v1571 = vpop.f32.mrf.mxu0
    %v1572 = vpop.f32.mrf.mxu0
    %v1573 = vadd.f32 %v1460, %v1572
    %v1574 = vpop.f32.mrf.mxu0
    %1575 = vmatprep.mubr.bf16.mxu0 0
    %1576 = vmatmul.mubr.bf16.gmra.mxu0 %v1323
    %v1577 = vpop.f32.mrf.mxu0
    %v1578 = vadd.f32 %v1465, %v1577
    %v1579 = vpop.f32.mrf.mxu0
    %v1580 = vpop.f32.mrf.mxu0
    %v1581 = vadd.f32 %v1468, %v1580
    %v1582 = vpop.f32.mrf.mxu0
    %1583 = vdwg.mxu0
    %s1584 = scalar_lea.vmem %s5, 2
    %v1585 = vld [vmem:[%s1584] sm:$0x1]
    %v1587 = vlaneseq
    %v1588 = vshrl.u32 %v1587, 7
    %v1589 = vsub.s32 0, %v1588
    %v1590 = vrot.slane %v1585, %v1589
    %v1592 = vmul.f32 %v1554, %v1590
    %v1593 = vmul.f32 %v1557, %v1590
    %v1594 = vmul.f32 %v1562, %v1590
    %v1595 = vmul.f32 %v1565, %v1590
    %v1596 = vmul.f32 %v1570, %v1590
    %v1597 = vmul.f32 %v1573, %v1590
    %v1598 = vmul.f32 %v1578, %v1590
    %v1599 = vmul.f32 %v1581, %v1590
    %s1600 = scalar_lea.vmem %s6, 2
    %v1601 = vld [vmem:[%s1600] sm:$0x1]
    %v1603 = vlaneseq
    %v1604 = vshrl.u32 %v1603, 7
    %v1605 = vsub.s32 0, %v1604
    %v1606 = vrot.slane %v1601, %v1605
    %v1608 = vadd.f32 %v1592, %v1606
    %v1609 = vadd.f32 %v1593, %v1606
    %v1610 = vadd.f32 %v1594, %v1606
    %v1611 = vadd.f32 %v1595, %v1606
    %v1612 = vadd.f32 %v1596, %v1606
    %v1613 = vadd.f32 %v1597, %v1606
    %v1614 = vadd.f32 %v1598, %v1606
    %v1615 = vadd.f32 %v1599, %v1606
    %1616 = vst [vmem:[#allocation8] sm:$0xff] %v1608
    %1617 = vst [vmem:[#allocation8 + $0x8] sm:$0xff] %v1609
    %1618 = vst [vmem:[#allocation8 + $0x10] sm:$0xff] %v1610
    %1619 = vst [vmem:[#allocation8 + $0x18] sm:$0xff] %v1611
    %1620 = vst [vmem:[#allocation8 + $0x20] sm:$0xff] %v1612
    %1621 = vst [vmem:[#allocation8 + $0x28] sm:$0xff] %v1613
    %1622 = vst [vmem:[#allocation8 + $0x30] sm:$0xff] %v1614
    %1623 = vst [vmem:[#allocation8 + $0x38] sm:$0xff] %v1615
    // Predicated region
    $region38: #{tpu_custom_call.1} parent=1 // pred_check
      _
    $region39: #{tpu_custom_call.1} parent=1 // pred_check_branch
      %1625 = sbr.rel (0) target = $region41
    $region40: #{tpu_custom_call.1} parent=1 // pred_region
      %s1627 = ssub.s32 1024, 1024
      %1628 = vsyncadd [#allocation5], %s1627
      %s1629 = sshll.u32 [#allocation8], 4
      %s1630 = int_to_ptr.vmem [resolvable:$true] %s1629
      %1635 = dma.vmem_to_hbm [thread:$0]  %s1630, 1024, %s7, [#allocation5], 128, 128, 8
    $region41: #{tpu_custom_call.1} parent=1 // pred_fallthru
      _
    // Predicated region
    $region42: #{tpu_custom_call.1} parent=1 // pred_check
      _
    $region43: #{tpu_custom_call.1} parent=1 // pred_check_branch
      %1637 = sbr.rel (0) target = $region45
    $region44: #{tpu_custom_call.1} parent=1 // pred_region
      %1638 = dma.done [#allocation5], 1024
    $region45: #{tpu_custom_call.1} parent=1 // pred_fallthru
      _
    %1639 = vsyncpa [#allocation4], 1
    %1640 = vsyncpa [#allocation7], 1
    %1641 = vsyncpa [#allocation5], 1

</llo_original>
